<compile_context>
chip_gen: v7x
topology: tpu7x:2x2x1
jax: 0.10.0
libtpu: 0.0.40
codegen_flags: <defaults>
</compile_context>

<pallas_src>
import math

import jax
import jax.numpy as jnp
import numpy as np
from jax import lax
from jax.experimental import pallas as pl
from jax.experimental.pallas import tpu as pltpu

# Make the pure-JAX reference matmuls (and the in-kernel dots) run at full f32 precision.
jax.config.update("jax_default_matmul_precision", "highest")


# ----------------------------------------------------------------------------
# Pallas kernel: one grid step = (one batch tile) x (one SSM layer)
# ----------------------------------------------------------------------------
def hope_kernel(x_ref, wenc_ref, benc_ref, k_ref, d_ref, bns_ref, bnb_ref,
                wdec_ref, bdec_ref, out_ref, carry_ref):
    """Activations are carried across the layer axis in `carry_ref` with layout
    (L, TB, H): sequence on the leading (non-tiled) axis, batch tile on sublanes,
    channels (H = 128) on lanes.  All elementwise work is lane-dense."""
    L, TB, H = carry_ref.shape
    li = pl.program_id(1)
    n_layers = pl.num_programs(1)

    # ---------------- encoder: only on the first layer step of each batch tile ----
    @pl.when(li == 0)
    def _encode():
        # x block is (L, TB, Din_pad); each (TB, Din_pad) slab is exactly (8,128)
        # tile-aligned, so merging the leading dims is a no-op reshape.  One MXU
        # matmul covers the whole batch tile; the store to carry is contiguous.
        din = x_ref.shape[-1]
        x2d = x_ref[...].reshape(L * TB, din)                  # (TB*L, Din_pad)
        h2d = jnp.dot(x2d, wenc_ref[...],
                      preferred_element_type=jnp.float32) + benc_ref[...]
        carry_ref[...] = h2d.reshape(L, TB, H)

    # ---------------- LTI layer: causal depthwise conv over L + D skip + GELU -----
    u = carry_ref[...]                                         # (L, TB, H)
    kk = k_ref[0]                                              # (L, H) SSM conv kernel

    # y[l, b, h] = sum_{s<=l} kk[s, h] * u[l-s, b, h]
    # Shift-and-MAC: shifting along the leading L axis is a cheap vreg re-selection
    # (concat of zero slabs + leading-dim slice); the MAC is a dense (8,128) VPU FMA.
    y = u * kk[0:1, :]                                         # s = 0 term
    for s in range(1, L):                                      # static, L small
        shifted = jnp.concatenate(
            [jnp.zeros((s, TB, H), dtype=jnp.float32), u[:L - s]], axis=0)
        y = y + shifted * kk[s:s + 1, :]

    y = y + u * d_ref[...]                                     # D * u skip, (1,1,H)
    y = jax.nn.gelu(y)                                         # LTI output activation
    # dropout == identity (eval); residual
    x_new = y + u
    # BatchNorm1d (eval mode): per-channel affine (running stats folded into scale/shift)
    x_new = x_new * bns_ref[...] + bnb_ref[...]
    carry_ref[...] = x_new

    # ---------------- pool over sequence + decoder: only on the last layer step ----
    @pl.when(li == n_layers - 1)
    def _decode():
        xm = jnp.mean(carry_ref[...], axis=0)                  # (TB, H), VPU-only reduce
        out_ref[...] = jnp.dot(xm, wdec_ref[...],
                               preferred_element_type=jnp.float32) + bdec_ref[...]


def hope_forward(x, wenc, benc, K, dvec, bn_scale, bn_shift, wdec, bdec,
                 *, batch_tile=8):
    B, L, d_input = x.shape
    n_layers, H, Lk = K.shape
    assert Lk == L
    d_output = wdec.shape[1]
    TB = batch_tile
    assert B % TB == 0, "batch must be divisible by the batch tile"
    assert TB % 8 == 0, "batch tile must fill sublanes (multiple of 8)"
    D_PAD = max(128, ((d_output + 127) // 128) * 128)          # lane-dense decoder width
    DIN_PAD = max(128, ((d_input + 127) // 128) * 128)         # lane-dense encoder input

    # --- parameter/activation layout plumbing (done once, outside the kernel) ---
    x_t = jnp.transpose(jnp.asarray(x, jnp.float32), (1, 0, 2))            # (L, B, Din)
    x_p = jnp.zeros((L, B, DIN_PAD), jnp.float32).at[:, :, :d_input].set(x_t)
    wenc_p = jnp.zeros((DIN_PAD, H), jnp.float32).at[:d_input, :].set(
        jnp.asarray(wenc, jnp.float32))
    benc_r = jnp.asarray(benc, jnp.float32).reshape(1, H)
    K_t = jnp.transpose(jnp.asarray(K, jnp.float32), (0, 2, 1))            # (n_layers,L,H)
    d3 = jnp.asarray(dvec, jnp.float32).reshape(n_layers, 1, H)
    bns3 = jnp.asarray(bn_scale, jnp.float32).reshape(n_layers, 1, H)
    bnb3 = jnp.asarray(bn_shift, jnp.float32).reshape(n_layers, 1, H)
    wdec_p = jnp.zeros((H, D_PAD), jnp.float32).at[:, :d_output].set(
        jnp.asarray(wdec, jnp.float32))
    bdec_p = jnp.zeros((1, D_PAD), jnp.float32).at[:, :d_output].set(
        jnp.asarray(bdec, jnp.float32).reshape(1, d_output))

    grid = (B // TB, n_layers)                                 # layer axis innermost
    out = pl.pallas_call(
        hope_kernel,
        out_shape=jax.ShapeDtypeStruct((B, D_PAD), jnp.float32),
        grid_spec=pltpu.PrefetchScalarGridSpec(
            num_scalar_prefetch=0,
            grid=grid,
            in_specs=[
                pl.BlockSpec((L, TB, DIN_PAD), lambda b, l: (0, b, 0)),   # x (padded)
                pl.BlockSpec((DIN_PAD, H),     lambda b, l: (0, 0)),      # wenc (padded)
                pl.BlockSpec((1, H),           lambda b, l: (0, 0)),      # benc
                pl.BlockSpec((1, L, H),        lambda b, l: (l, 0, 0)),   # per-layer K
                pl.BlockSpec((1, 1, H),        lambda b, l: (l, 0, 0)),   # per-layer D
                pl.BlockSpec((1, 1, H),        lambda b, l: (l, 0, 0)),   # BN scale
                pl.BlockSpec((1, 1, H),        lambda b, l: (l, 0, 0)),   # BN shift
                pl.BlockSpec((H, D_PAD),       lambda b, l: (0, 0)),      # wdec (padded)
                pl.BlockSpec((1, D_PAD),       lambda b, l: (0, 0)),      # bdec (padded)
            ],
            out_specs=pl.BlockSpec((TB, D_PAD), lambda b, l: (b, 0)),
            scratch_shapes=[pltpu.VMEM((L, TB, H), jnp.float32)],         # layer carry
        ),
        compiler_params=pltpu.CompilerParams(
            dimension_semantics=("parallel", "arbitrary"),
            vmem_limit_bytes=32 * 1024 * 1024,     # fits v5e/v6e/v7x scoped VMEM easily
        ),
    )(x_p, wenc_p, benc_r, K_t, d3, bns3, bnb3, wdec_p, bdec_p)
    return out[:, :d_output]


# ----------------------------------------------------------------------------
# Parameter setup (glue, plain JAX): deterministic init + S4D-style SSM kernel
# ----------------------------------------------------------------------------
def make_ssm_conv_kernel(key, H, N, L, dt_min, dt_max, cfr, cfi):
    """S4D-style causal convolution kernel K of shape (H, L)."""
    k_dt, k_cr, k_ci = jax.random.split(key, 3)
    log_dt = (jax.random.uniform(k_dt, (H,)) *
              (math.log(dt_max) - math.log(dt_min)) + math.log(dt_min))
    dt = jnp.exp(log_dt)                                           # (H,)
    a_re = -0.5 * cfr * jnp.ones((H, N))
    a_im = cfi * math.pi * jnp.broadcast_to(jnp.arange(N, dtype=jnp.float32), (H, N))
    A = a_re + 1j * a_im                                           # (H, N) complex
    C = (jax.random.normal(k_cr, (H, N)) + 1j * jax.random.normal(k_ci, (H, N))) * 0.5
    dtA = dt[:, None] * A                                          # (H, N)
    powers = jnp.exp(dtA[:, :, None] * jnp.arange(L, dtype=jnp.float32)[None, None, :])
    B_disc = (jnp.exp(dtA) - 1.0) / A
    K = 2.0 * jnp.real(jnp.einsum('hn,hnl->hl', C * B_disc, powers))
    return K.astype(jnp.float32)                                   # (H, L)


# ----------------------------------------------------------------------------
# Pure-JAX reference of the same forward (for correctness check)
# ----------------------------------------------------------------------------
def hope_reference(x, wenc, benc, K, dvec, bn_scale, bn_shift, wdec, bdec):
    n_layers, H, L = K.shape
    idx = jnp.arange(L)
    diff = idx[:, None] - idx[None, :]                              # (L, L)
    h = jnp.einsum('bld,dh->blh', x, wenc) + benc.reshape(1, 1, H)
    for li in range(n_layers):
        Kl = K[li]                                                  # (H, L)
        T = jnp.where(diff >= 0, Kl[:, jnp.clip(diff, 0, L - 1)], 0.0)   # (H, L, L)
        u = h
        y = jnp.einsum('hlj,bjh->blh', T, u) + u * dvec[li][None, None, :]
        y = jax.nn.gelu(y)
        h = y + u
        h = h * bn_scale[li][None, None, :] + bn_shift[li][None, None, :]
    return jnp.mean(h, axis=1) @ wdec + bdec.reshape(1, -1)


if __name__ == "__main__":
    # Small shapes consistent with the module's forward: x is (B, L, d_input).
    # d_model = 128 so the channel axis is lane-dense; B = 16 with batch_tile = 8 so
    # sublanes are full and there are 2 "parallel" batch tiles (megacore/v7x).
    B, L, d_input = 16, 8, 4
    d_model, d_state, n_layers, d_output = 128, 8, 4, 1
    cfg = dict(dt_min=1e-3, dt_max=1e-1, cfr=1.0, cfi=1.0)

    key = jax.random.PRNGKey(0)
    keys = jax.random.split(key, 8 + n_layers)

    x = jax.random.normal(keys[0], (B, L, d_input), dtype=jnp.float32)

    # encoder / decoder linears
    wenc = jax.random.normal(keys[1], (d_input, d_model), dtype=jnp.float32) / math.sqrt(d_input)
    benc = 0.01 * jax.random.normal(keys[2], (d_model,), dtype=jnp.float32)
    wdec = jax.random.normal(keys[3], (d_model, d_output), dtype=jnp.float32) / math.sqrt(d_model)
    bdec = 0.01 * jax.random.normal(keys[4], (d_output,), dtype=jnp.float32)

    # per-layer SSM conv kernels, D skip, BatchNorm affine
    k_list, d_list = [], []
    for li in range(n_layers):
        k_list.append(make_ssm_conv_kernel(keys[5 + li], d_model, d_state, L,
                                           cfg['dt_min'], cfg['dt_max'],
                                           cfg['cfr'], cfg['cfi']))
        d_list.append(jax.random.normal(jax.random.fold_in(keys[5 + n_layers], li),
                                        (d_model,), dtype=jnp.float32))
    K = jnp.stack(k_list, axis=0)                                   # (n_layers, H, L)
    dvec = jnp.stack(d_list, axis=0)                                # (n_layers, H)

    gamma = 1.0 + 0.1 * jax.random.normal(jax.random.fold_in(keys[6 + n_layers], 0),
                                          (n_layers, d_model), dtype=jnp.float32)
    beta = 0.1 * jax.random.normal(jax.random.fold_in(keys[6 + n_layers], 1),
                                   (n_layers, d_model), dtype=jnp.float32)
    eps = 1e-5
    bn_scale = gamma / jnp.sqrt(1.0 + eps)   # eval-mode BN: running_mean=0, running_var=1
    bn_shift = beta

    out = hope_forward(x, wenc, benc, K, dvec, bn_scale, bn_shift, wdec, bdec,
                       batch_tile=8)
    out = jax.block_until_ready(out)

    ref = hope_reference(x, wenc, benc, K, dvec, bn_scale, bn_shift, wdec, bdec)
    np.testing.assert_allclose(np.asarray(out), np.asarray(ref), rtol=2e-4, atol=2e-4)

    print("KERNEL_OK")
</pallas_src>

<mosaic_0001>
module attributes {stable_mosaic.version = 11 : i64} {
  func.func @hope_kernel(%arg0: i32, %arg1: i32, %arg2: memref<8x8x128xf32, #tpu.memory_space<vmem>>, %arg3: memref<128x128xf32, #tpu.memory_space<vmem>>, %arg4: memref<1x128xf32, #tpu.memory_space<vmem>>, %arg5: memref<1x8x128xf32, #tpu.memory_space<vmem>>, %arg6: memref<1x1x128xf32, #tpu.memory_space<vmem>>, %arg7: memref<1x1x128xf32, #tpu.memory_space<vmem>>, %arg8: memref<1x1x128xf32, #tpu.memory_space<vmem>>, %arg9: memref<128x128xf32, #tpu.memory_space<vmem>>, %arg10: memref<1x128xf32, #tpu.memory_space<vmem>>, %arg11: memref<8x128xf32, #tpu.memory_space<vmem>>, %arg12: memref<8x8x128xf32, #tpu.memory_space<vmem>>) attributes {dimension_semantics = [#tpu.dimension_semantics<parallel>, #tpu.dimension_semantics<arbitrary>], iteration_bounds = array<i64: 2, 4>, scalar_prefetch = 0 : i64, scratch_operands = 1 : i64, tpu.core_type = #tpu.core_type<tc>, window_params = [{transform_indices = @transform_0, window_bounds = array<i64: 8, 8, 128>}, {pipeline_mode = #tpu.pipeline_mode<synchronous>, transform_indices = @transform_1, window_bounds = array<i64: 128, 128>}, {pipeline_mode = #tpu.pipeline_mode<synchronous>, transform_indices = @transform_2, window_bounds = array<i64: 1, 128>}, {transform_indices = @transform_3, window_bounds = array<i64: 1, 8, 128>}, {transform_indices = @transform_4, window_bounds = array<i64: 1, 1, 128>}, {transform_indices = @transform_5, window_bounds = array<i64: 1, 1, 128>}, {transform_indices = @transform_6, window_bounds = array<i64: 1, 1, 128>}, {pipeline_mode = #tpu.pipeline_mode<synchronous>, transform_indices = @transform_7, window_bounds = array<i64: 128, 128>}, {pipeline_mode = #tpu.pipeline_mode<synchronous>, transform_indices = @transform_8, window_bounds = array<i64: 1, 128>}, {transform_indices = @transform_9, window_bounds = array<i64: 8, 128>}]} {
    %c0_i32 = arith.constant 0 : i32
    %0 = arith.cmpi eq, %arg1, %c0_i32 : i32
    %1 = arith.extui %0 : i1 to i32
    %c0_i32_0 = arith.constant 0 : i32
    %2 = arith.cmpi ne, %1, %c0_i32_0 : i32
    scf.if %2 {
      %c0_29 = arith.constant 0 : index
      %c0_30 = arith.constant 0 : index
      %c0_31 = arith.constant 0 : index
      %94 = vector.load %arg2[%c0_29, %c0_30, %c0_31] : memref<8x8x128xf32, #tpu.memory_space<vmem>>, vector<8x8x128xf32>
      %95 = vector.shape_cast %94 : vector<8x8x128xf32> to vector<64x128xf32>
      %c0_32 = arith.constant 0 : index
      %c0_33 = arith.constant 0 : index
      %96 = vector.load %arg3[%c0_32, %c0_33] : memref<128x128xf32, #tpu.memory_space<vmem>>, vector<128x128xf32>
      %cst_34 = arith.constant dense<0.000000e+00> : vector<64x128xf32>
      %97 = tpu.matmul %95, %96, %cst_34 {dimension_numbers = #tpu.dot_dimension_numbers<[1], [0], [0], [1], [0, 0, 1, 1], [], []>, precision = #tpu.contract_precision<fp32>} : vector<64x128xf32>, vector<128x128xf32>, vector<64x128xf32> -> vector<64x128xf32>
      %c0_35 = arith.constant 0 : index
      %c0_36 = arith.constant 0 : index
      %98 = vector.load %arg4[%c0_35, %c0_36] : memref<1x128xf32, #tpu.memory_space<vmem>>, vector<1x128xf32>
      %99 = vector.broadcast %98 : vector<1x128xf32> to vector<64x128xf32>
      %100 = arith.addf %97, %99 : vector<64x128xf32>
      %101 = vector.shape_cast %100 : vector<64x128xf32> to vector<8x8x128xf32>
      %c0_37 = arith.constant 0 : index
      %c0_38 = arith.constant 0 : index
      %c0_39 = arith.constant 0 : index
      %102 = vector.load %arg12[%c0_37, %c0_38, %c0_39] : memref<8x8x128xf32, #tpu.memory_space<vmem>>, vector<8x8x128xf32>
      tpu.vector_store %arg12[%c0_37, %c0_38, %c0_39], %101 {strides = array<i32>} : memref<8x8x128xf32, #tpu.memory_space<vmem>>, vector<8x8x128xf32>,
    } else {
    }
    %c0 = arith.constant 0 : index
    %c0_1 = arith.constant 0 : index
    %c0_2 = arith.constant 0 : index
    %3 = vector.load %arg12[%c0, %c0_1, %c0_2] : memref<8x8x128xf32, #tpu.memory_space<vmem>>, vector<8x8x128xf32>
    %c0_3 = arith.constant 0 : index
    %c0_4 = arith.constant 0 : index
    %c0_5 = arith.constant 0 : index
    %4 = vector.load %arg5[%c0_3, %c0_4, %c0_5] : memref<1x8x128xf32, #tpu.memory_space<vmem>>, vector<1x8x128xf32>
    %5 = vector.shape_cast %4 : vector<1x8x128xf32> to vector<8x128xf32>
    %6 = vector.extract_strided_slice %5 {offsets = [0, 0], sizes = [1, 128], strides = [1, 1]} : vector<8x128xf32> to vector<1x128xf32>
    %7 = vector.shape_cast %6 : vector<1x128xf32> to vector<1x1x128xf32>
    %8 = vector.broadcast %7 : vector<1x1x128xf32> to vector<8x8x128xf32>
    %9 = arith.mulf %3, %8 : vector<8x8x128xf32>
    %cst = arith.constant 0.000000e+00 : f32
    %10 = vector.broadcast %cst : f32 to vector<1x8x128xf32>
    %11 = vector.extract_strided_slice %3 {offsets = [0, 0, 0], sizes = [7, 8, 128], strides = [1, 1, 1]} : vector<8x8x128xf32> to vector<7x8x128xf32>
    %12 = tpu.concatenate %10, %11 in 0 : vector<1x8x128xf32>, vector<7x8x128xf32> -> vector<8x8x128xf32>
    %13 = vector.extract_strided_slice %5 {offsets = [1, 0], sizes = [1, 128], strides = [1, 1]} : vector<8x128xf32> to vector<1x128xf32>
    %14 = vector.shape_cast %13 : vector<1x128xf32> to vector<1x1x128xf32>
    %15 = vector.broadcast %14 : vector<1x1x128xf32> to vector<8x8x128xf32>
    %16 = arith.mulf %12, %15 : vector<8x8x128xf32>
    %17 = arith.addf %9, %16 : vector<8x8x128xf32>
    %cst_6 = arith.constant 0.000000e+00 : f32
    %18 = vector.broadcast %cst_6 : f32 to vector<2x8x128xf32>
    %19 = vector.extract_strided_slice %3 {offsets = [0, 0, 0], sizes = [6, 8, 128], strides = [1, 1, 1]} : vector<8x8x128xf32> to vector<6x8x128xf32>
    %20 = tpu.concatenate %18, %19 in 0 : vector<2x8x128xf32>, vector<6x8x128xf32> -> vector<8x8x128xf32>
    %21 = vector.extract_strided_slice %5 {offsets = [2, 0], sizes = [1, 128], strides = [1, 1]} : vector<8x128xf32> to vector<1x128xf32>
    %22 = vector.shape_cast %21 : vector<1x128xf32> to vector<1x1x128xf32>
    %23 = vector.broadcast %22 : vector<1x1x128xf32> to vector<8x8x128xf32>
    %24 = arith.mulf %20, %23 : vector<8x8x128xf32>
    %25 = arith.addf %17, %24 : vector<8x8x128xf32>
    %cst_7 = arith.constant 0.000000e+00 : f32
    %26 = vector.broadcast %cst_7 : f32 to vector<3x8x128xf32>
    %27 = vector.extract_strided_slice %3 {offsets = [0, 0, 0], sizes = [5, 8, 128], strides = [1, 1, 1]} : vector<8x8x128xf32> to vector<5x8x128xf32>
    %28 = tpu.concatenate %26, %27 in 0 : vector<3x8x128xf32>, vector<5x8x128xf32> -> vector<8x8x128xf32>
    %29 = vector.extract_strided_slice %5 {offsets = [3, 0], sizes = [1, 128], strides = [1, 1]} : vector<8x128xf32> to vector<1x128xf32>
    %30 = vector.shape_cast %29 : vector<1x128xf32> to vector<1x1x128xf32>
    %31 = vector.broadcast %30 : vector<1x1x128xf32> to vector<8x8x128xf32>
    %32 = arith.mulf %28, %31 : vector<8x8x128xf32>
    %33 = arith.addf %25, %32 : vector<8x8x128xf32>
    %cst_8 = arith.constant 0.000000e+00 : f32
    %34 = vector.broadcast %cst_8 : f32 to vector<4x8x128xf32>
    %35 = vector.extract_strided_slice %3 {offsets = [0, 0, 0], sizes = [4, 8, 128], strides = [1, 1, 1]} : vector<8x8x128xf32> to vector<4x8x128xf32>
    %36 = tpu.concatenate %34, %35 in 0 : vector<4x8x128xf32>, vector<4x8x128xf32> -> vector<8x8x128xf32>
    %37 = vector.extract_strided_slice %5 {offsets = [4, 0], sizes = [1, 128], strides = [1, 1]} : vector<8x128xf32> to vector<1x128xf32>
    %38 = vector.shape_cast %37 : vector<1x128xf32> to vector<1x1x128xf32>
    %39 = vector.broadcast %38 : vector<1x1x128xf32> to vector<8x8x128xf32>
    %40 = arith.mulf %36, %39 : vector<8x8x128xf32>
    %41 = arith.addf %33, %40 : vector<8x8x128xf32>
    %cst_9 = arith.constant 0.000000e+00 : f32
    %42 = vector.broadcast %cst_9 : f32 to vector<5x8x128xf32>
    %43 = vector.extract_strided_slice %3 {offsets = [0, 0, 0], sizes = [3, 8, 128], strides = [1, 1, 1]} : vector<8x8x128xf32> to vector<3x8x128xf32>
    %44 = tpu.concatenate %42, %43 in 0 : vector<5x8x128xf32>, vector<3x8x128xf32> -> vector<8x8x128xf32>
    %45 = vector.extract_strided_slice %5 {offsets = [5, 0], sizes = [1, 128], strides = [1, 1]} : vector<8x128xf32> to vector<1x128xf32>
    %46 = vector.shape_cast %45 : vector<1x128xf32> to vector<1x1x128xf32>
    %47 = vector.broadcast %46 : vector<1x1x128xf32> to vector<8x8x128xf32>
    %48 = arith.mulf %44, %47 : vector<8x8x128xf32>
    %49 = arith.addf %41, %48 : vector<8x8x128xf32>
    %cst_10 = arith.constant 0.000000e+00 : f32
    %50 = vector.broadcast %cst_10 : f32 to vector<6x8x128xf32>
    %51 = vector.extract_strided_slice %3 {offsets = [0, 0, 0], sizes = [2, 8, 128], strides = [1, 1, 1]} : vector<8x8x128xf32> to vector<2x8x128xf32>
    %52 = tpu.concatenate %50, %51 in 0 : vector<6x8x128xf32>, vector<2x8x128xf32> -> vector<8x8x128xf32>
    %53 = vector.extract_strided_slice %5 {offsets = [6, 0], sizes = [1, 128], strides = [1, 1]} : vector<8x128xf32> to vector<1x128xf32>
    %54 = vector.shape_cast %53 : vector<1x128xf32> to vector<1x1x128xf32>
    %55 = vector.broadcast %54 : vector<1x1x128xf32> to vector<8x8x128xf32>
    %56 = arith.mulf %52, %55 : vector<8x8x128xf32>
    %57 = arith.addf %49, %56 : vector<8x8x128xf32>
    %cst_11 = arith.constant 0.000000e+00 : f32
    %58 = vector.broadcast %cst_11 : f32 to vector<7x8x128xf32>
    %59 = vector.extract_strided_slice %3 {offsets = [0, 0, 0], sizes = [1, 8, 128], strides = [1, 1, 1]} : vector<8x8x128xf32> to vector<1x8x128xf32>
    %60 = tpu.concatenate %58, %59 in 0 : vector<7x8x128xf32>, vector<1x8x128xf32> -> vector<8x8x128xf32>
    %61 = vector.extract_strided_slice %5 {offsets = [7, 0], sizes = [1, 128], strides = [1, 1]} : vector<8x128xf32> to vector<1x128xf32>
    %62 = vector.shape_cast %61 : vector<1x128xf32> to vector<1x1x128xf32>
    %63 = vector.broadcast %62 : vector<1x1x128xf32> to vector<8x8x128xf32>
    %64 = arith.mulf %60, %63 : vector<8x8x128xf32>
    %65 = arith.addf %57, %64 : vector<8x8x128xf32>
    %c0_12 = arith.constant 0 : index
    %c0_13 = arith.constant 0 : index
    %c0_14 = arith.constant 0 : index
    %66 = vector.load %arg6[%c0_12, %c0_13, %c0_14] : memref<1x1x128xf32, #tpu.memory_space<vmem>>, vector<1x1x128xf32>
    %67 = vector.broadcast %66 : vector<1x1x128xf32> to vector<8x8x128xf32>
    %68 = arith.mulf %3, %67 : vector<8x8x128xf32>
    %69 = arith.addf %65, %68 : vector<8x8x128xf32>
    %70 = arith.mulf %69, %69 : vector<8x8x128xf32>
    %71 = arith.mulf %69, %70 : vector<8x8x128xf32>
    %cst_15 = arith.constant 4.471500e-02 : f32
    %72 = vector.broadcast %cst_15 : f32 to vector<8x8x128xf32>
    %73 = arith.mulf %72, %71 : vector<8x8x128xf32>
    %74 = arith.addf %69, %73 : vector<8x8x128xf32>
    %cst_16 = arith.constant 0.797884583 : f32
    %75 = vector.broadcast %cst_16 : f32 to vector<8x8x128xf32>
    %76 = arith.mulf %75, %74 : vector<8x8x128xf32>
    %77 = math.tanh %76 : vector<8x8x128xf32>
    %cst_17 = arith.constant 1.000000e+00 : f32
    %78 = vector.broadcast %cst_17 : f32 to vector<8x8x128xf32>
    %79 = arith.addf %78, %77 : vector<8x8x128xf32>
    %cst_18 = arith.constant 5.000000e-01 : f32
    %80 = vector.broadcast %cst_18 : f32 to vector<8x8x128xf32>
    %81 = arith.mulf %80, %79 : vector<8x8x128xf32>
    %82 = arith.mulf %69, %81 : vector<8x8x128xf32>
    %83 = arith.addf %82, %3 : vector<8x8x128xf32>
    %c0_19 = arith.constant 0 : index
    %c0_20 = arith.constant 0 : index
    %c0_21 = arith.constant 0 : index
    %84 = vector.load %arg7[%c0_19, %c0_20, %c0_21] : memref<1x1x128xf32, #tpu.memory_space<vmem>>, vector<1x1x128xf32>
    %85 = vector.broadcast %84 : vector<1x1x128xf32> to vector<8x8x128xf32>
    %86 = arith.mulf %83, %85 : vector<8x8x128xf32>
    %c0_22 = arith.constant 0 : index
    %c0_23 = arith.constant 0 : index
    %c0_24 = arith.constant 0 : index
    %87 = vector.load %arg8[%c0_22, %c0_23, %c0_24] : memref<1x1x128xf32, #tpu.memory_space<vmem>>, vector<1x1x128xf32>
    %88 = vector.broadcast %87 : vector<1x1x128xf32> to vector<8x8x128xf32>
    %89 = arith.addf %86, %88 : vector<8x8x128xf32>
    %c0_25 = arith.constant 0 : index
    %c0_26 = arith.constant 0 : index
    %c0_27 = arith.constant 0 : index
    %90 = vector.load %arg12[%c0_25, %c0_26, %c0_27] : memref<8x8x128xf32, #tpu.memory_space<vmem>>, vector<8x8x128xf32>
    tpu.vector_store %arg12[%c0_25, %c0_26, %c0_27], %89 {strides = array<i32>} : memref<8x8x128xf32, #tpu.memory_space<vmem>>, vector<8x8x128xf32>,
    %c3_i32 = arith.constant 3 : i32
    %91 = arith.cmpi eq, %arg1, %c3_i32 : i32
    %92 = arith.extui %91 : i1 to i32
    %c0_i32_28 = arith.constant 0 : i32
    %93 = arith.cmpi ne, %92, %c0_i32_28 : i32
    scf.if %93 {
      %c0_29 = arith.constant 0 : index
      %c0_30 = arith.constant 0 : index
      %c0_31 = arith.constant 0 : index
      %94 = vector.load %arg12[%c0_29, %c0_30, %c0_31] : memref<8x8x128xf32, #tpu.memory_space<vmem>>, vector<8x8x128xf32>
      %cst_32 = arith.constant dense<0.000000e+00> : vector<8x128xf32>
      %95 = vector.multi_reduction <add>, %94, %cst_32 [0] : vector<8x8x128xf32> to vector<8x128xf32>
      %cst_33 = arith.constant 8.000000e+00 : f32
      %96 = vector.broadcast %cst_33 : f32 to vector<8x128xf32>
      %97 = arith.divf %95, %96 : vector<8x128xf32>
      %c0_34 = arith.constant 0 : index
      %c0_35 = arith.constant 0 : index
      %98 = vector.load %arg9[%c0_34, %c0_35] : memref<128x128xf32, #tpu.memory_space<vmem>>, vector<128x128xf32>
      %cst_36 = arith.constant dense<0.000000e+00> : vector<8x128xf32>
      %99 = tpu.matmul %97, %98, %cst_36 {dimension_numbers = #tpu.dot_dimension_numbers<[1], [0], [0], [1], [0, 0, 1, 1], [], []>, precision = #tpu.contract_precision<fp32>} : vector<8x128xf32>, vector<128x128xf32>, vector<8x128xf32> -> vector<8x128xf32>
      %c0_37 = arith.constant 0 : index
      %c0_38 = arith.constant 0 : index
      %100 = vector.load %arg10[%c0_37, %c0_38] : memref<1x128xf32, #tpu.memory_space<vmem>>, vector<1x128xf32>
      %101 = vector.broadcast %100 : vector<1x128xf32> to vector<8x128xf32>
      %102 = arith.addf %99, %101 : vector<8x128xf32>
      %c0_39 = arith.constant 0 : index
      %c0_40 = arith.constant 0 : index
      %103 = vector.load %arg11[%c0_39, %c0_40] : memref<8x128xf32, #tpu.memory_space<vmem>>, vector<8x128xf32>
      tpu.vector_store %arg11[%c0_39, %c0_40], %102 {strides = array<i32>} : memref<8x128xf32, #tpu.memory_space<vmem>>, vector<8x128xf32>,
    } else {
    }
    return
  }
  func.func @transform_0(%arg0: i32, %arg1: i32) -> (i32, i32, i32) {
    %c0_i32 = arith.constant 0 : i32
    %c0_i32_0 = arith.constant 0 : i32
    %c0_i32_1 = arith.constant 0 : i32
    return %c0_i32, %arg0, %c0_i32_0 : i32, i32, i32
  }
  func.func @transform_1(%arg0: i32, %arg1: i32) -> (i32, i32) {
    %c0_i32 = arith.constant 0 : i32
    %c0_i32_0 = arith.constant 0 : i32
    %c0_i32_1 = arith.constant 0 : i32
    return %c0_i32, %c0_i32_0 : i32, i32
  }
  func.func @transform_2(%arg0: i32, %arg1: i32) -> (i32, i32) {
    %c0_i32 = arith.constant 0 : i32
    %c0_i32_0 = arith.constant 0 : i32
    %c0_i32_1 = arith.constant 0 : i32
    return %c0_i32, %c0_i32_0 : i32, i32
  }
  func.func @transform_3(%arg0: i32, %arg1: i32) -> (i32, i32, i32) {
    %c0_i32 = arith.constant 0 : i32
    %c0_i32_0 = arith.constant 0 : i32
    %c0_i32_1 = arith.constant 0 : i32
    return %arg1, %c0_i32, %c0_i32_0 : i32, i32, i32
  }
  func.func @transform_4(%arg0: i32, %arg1: i32) -> (i32, i32, i32) {
    %c0_i32 = arith.constant 0 : i32
    %c0_i32_0 = arith.constant 0 : i32
    %c0_i32_1 = arith.constant 0 : i32
    return %arg1, %c0_i32, %c0_i32_0 : i32, i32, i32
  }
  func.func @transform_5(%arg0: i32, %arg1: i32) -> (i32, i32, i32) {
    %c0_i32 = arith.constant 0 : i32
    %c0_i32_0 = arith.constant 0 : i32
    %c0_i32_1 = arith.constant 0 : i32
    return %arg1, %c0_i32, %c0_i32_0 : i32, i32, i32
  }
  func.func @transform_6(%arg0: i32, %arg1: i32) -> (i32, i32, i32) {
    %c0_i32 = arith.constant 0 : i32
    %c0_i32_0 = arith.constant 0 : i32
    %c0_i32_1 = arith.constant 0 : i32
    return %arg1, %c0_i32, %c0_i32_0 : i32, i32, i32
  }
  func.func @transform_7(%arg0: i32, %arg1: i32) -> (i32, i32) {
    %c0_i32 = arith.constant 0 : i32
    %c0_i32_0 = arith.constant 0 : i32
    %c0_i32_1 = arith.constant 0 : i32
    return %c0_i32, %c0_i32_0 : i32, i32
  }
  func.func @transform_8(%arg0: i32, %arg1: i32) -> (i32, i32) {
    %c0_i32 = arith.constant 0 : i32
    %c0_i32_0 = arith.constant 0 : i32
    %c0_i32_1 = arith.constant 0 : i32
    return %c0_i32, %c0_i32_0 : i32, i32
  }
  func.func @transform_9(%arg0: i32, %arg1: i32) -> (i32, i32) {
    %c0_i32 = arith.constant 0 : i32
    %c0_i32_0 = arith.constant 0 : i32
    return %arg0, %c0_i32 : i32, i32
  }
}

</mosaic_0001>

<llo_original>
// kernel: tpu_custom_call.1
$region0: #{tpu_custom_call.1}
  #allocation0 [shape = 'u32[]', space=smem, size = 0x4, offset = 0x4, fixed_abs, tag = 'smem constant byte address 0x4 - core index']
  #allocation1 [shape = 'u32[144,128]{1,0:T(1,128)}', space=vmem, size = 0x12000, scoped, tag = 'internal scratch']
  #allocation2 [shape = 'f32[8,8,128]{2,1,0:T(8,128)}', space=vmem, size = 0x8000, scoped, tag = 'scratch operand']
  %s0 = inlined_call_operand.hbm [shape: f32[8,16,128], index: 0, kind: input, shape index: {}]
  %s1 = inlined_call_operand.hbm [shape: f32[128,128], index: 1, kind: input, shape index: {}]
  %s2 = inlined_call_operand.vmem [shape: f32[1,128], index: 2, kind: input, shape index: {}]
  %s3 = inlined_call_operand.hbm [shape: f32[4,8,128], index: 3, kind: input, shape index: {}]
  %s4 = inlined_call_operand.vmem [shape: f32[4,1,128], index: 4, kind: input, shape index: {}]
  %s5 = inlined_call_operand.vmem [shape: f32[4,1,128], index: 5, kind: input, shape index: {}]
  %s6 = inlined_call_operand.vmem [shape: f32[4,1,128], index: 6, kind: input, shape index: {}]
  %s7 = inlined_call_operand.hbm [shape: f32[128,128], index: 7, kind: input, shape index: {}]
  %s8 = inlined_call_operand.vmem [shape: f32[1,128], index: 8, kind: input, shape index: {}]
  %s9 = inlined_call_operand.hbm [shape: f32[16,128], index: 9, kind: output, shape index: {}]
  %s10 = sld [smem:[#allocation0]]
  $region93: #{tpu_custom_call.1} parent=0
    _
  %s12 = ssub.s32 1, %s10
  %s13 = scalar_select 0, %s12, %s10
  $region1: #{tpu_custom_call.1} parent=0
    #allocation3 [shape = 'u8[65536]{0}', space=vmem, size = 0x10000, scoped, tag = 'input window, operand 0']
    #allocation4 [shape = 's32[2]{0}', space=sflag, size = 0x8, scoped, tag = 'scoped memory for tpu_custom_call.1']
    #allocation5 [shape = 's32[2]{0}', space=sflag, size = 0x8, scoped, tag = 'scoped memory for tpu_custom_call.1']
    #allocation6 [shape = 'u8[65536]{0}', space=vmem, size = 0x10000, scoped, tag = 'input window, operand 1, single buffered']
    #allocation7 [shape = 's32[1]{0}', space=sflag, size = 0x4, scoped, tag = 'scoped memory for tpu_custom_call.1']
    #allocation8 [shape = 'u8[8192]{0}', space=vmem, size = 0x2000, scoped, tag = 'input window, operand 3']
    #allocation9 [shape = 'u8[65536]{0}', space=vmem, size = 0x10000, scoped, tag = 'input window, operand 7, single buffered']
    #allocation10 [shape = 'u8[8192]{0}', space=vmem, size = 0x2000, scoped, tag = 'output window, operand 0']
    %14 = vsyncpa [#allocation4], 0
    %s15 = scalar_lea.sflag [#allocation4], 1
    %16 = vsyncpa %s15, 0
    %17 = vsyncpa [#allocation7], 0
    %18 = vsyncpa [#allocation5], 0
    %s19 = scalar_lea.sflag [#allocation5], 1
    %20 = vsyncpa %s19, 0
    loop: start=0, step=1, limit=10
    $region2: #{tpu_custom_call.1} parent=1 // loop_pre_header
      _
    $region3: #{tpu_custom_call.1} parent=1 // loop_header
      %s22 = sphi 0, %s26
      %p23 = scmp.ge.s32.totalorder %s22, 10
      %s29 = sphi 0, %s41
      %s30 = sphi 0, %s37
      %s31 = sphi 0, %s29
      %s32 = sphi 0, %s30
      %s33 = sphi 0, %s31
      %s34 = sphi 0, %s32
      %s44 = sphi 0, %s46
      %s47 = sphi 0, %s44
      %s48 = sphi 0, %s47
      %s64 = sphi 0, %s48
      %s68 = sphi 0, %s68
      %s70 = sphi 0, %s68
      %s71 = sphi 0, %s70
      %s85 = sphi 0, %s71
      %s89 = sphi 0, %s89
      %s91 = sphi 0, %s89
      %s92 = sphi 0, %s91
      %s106 = sphi 0, %s92
      %s112 = sphi 0, %s114
      %s115 = sphi 0, %s112
      %s116 = sphi 0, %s115
      %s132 = sphi 0, %s116
      %s138 = sphi 0, %s140
      %s141 = sphi 0, %s138
      %s142 = sphi 0, %s141
      %s158 = sphi 0, %s142
      %s164 = sphi 0, %s166
      %s167 = sphi 0, %s164
      %s168 = sphi 0, %s167
      %s184 = sphi 0, %s168
      %s190 = sphi 0, %s192
      %s193 = sphi 0, %s190
      %s194 = sphi 0, %s193
      %s210 = sphi 0, %s194
      %s214 = sphi 0, %s214
      %s216 = sphi 0, %s214
      %s217 = sphi 0, %s216
      %s231 = sphi 0, %s217
      %s235 = sphi 0, %s235
      %s237 = sphi 0, %s235
      %s238 = sphi 0, %s237
      %s252 = sphi 0, %s238
      %s258 = sphi 0, %s260
      %s261 = sphi 0, %s258
      %s262 = sphi 0, %s261
      %s278 = sphi 0, %s262
    $region4: #{tpu_custom_call.1} parent=1 // loop_header_branch
      %25 = sbr.rel (%p23) target = $region8
    $region5: #{tpu_custom_call.1} parent=1 // loop_body
      %s27 = ssub.s32 %s22, 1
      %s28 = ssub.s32 %s22, 2
      %s35 = sadd.s32 1, %s30
      %p36 = scmp.ge.s32.totalorder %s35, 4
      %s37 = scalar_select %p36, 0, %s35
      %s38 = sadd.s32 1, %s29
      %s39 = scalar_select %p36, %s38, %s29
      %p40 = scmp.ge.s32.totalorder %s39, 2
      %s41 = scalar_select %p40, 0, %s39
      %s42 = ssub.s32 %s29, %s41
      %p43 = scmp.eq.s32.totalorder %s42, 0
      %s45 = sadd.s32 %s44, 1
      %s46 = scalar_select %p43, %s44, %s45
      %p49 = pneg %p43
      %p50 = scmp.eq.s32.totalorder %s22, 7
      %p51 = por %p49, %p50
      %p52 = scmp.ne.s32.totalorder %s44, %s47
      %p53 = scmp.eq.s32.totalorder %s22, 0
      %p54 = por %p52, %p53
      %p55 = scmp.ne.s32.totalorder %s44, %s47
      %p56 = scmp.eq.s32.totalorder %s27, 7
      %p57 = por %p55, %p56
      %p58 = scmp.ne.s32.totalorder %s47, %s48
      %p59 = scmp.eq.s32.totalorder %s27, 0
      %p60 = por %p58, %p59
      %p61 = scmp.ne.s32.totalorder %s47, %s48
      %p62 = scmp.eq.s32.totalorder %s28, 7
      %p63 = por %p61, %p62
      %p65 = scmp.ne.s32.totalorder %s48, %s64
      %p66 = scmp.eq.s32.totalorder %s28, 0
      %p67 = por %p65, %p66
      %s69 = sadd.s32 %s68, 1
      %p72 = scmp.eq.s32.totalorder %s22, 7
      %p73 = scmp.ne.s32.totalorder %s68, %s70
      %p74 = scmp.eq.s32.totalorder %s22, 0
      %p75 = por %p73, %p74
      %p76 = scmp.ne.s32.totalorder %s68, %s70
      %p77 = scmp.eq.s32.totalorder %s27, 7
      %p78 = por %p76, %p77
      %p79 = scmp.ne.s32.totalorder %s70, %s71
      %p80 = scmp.eq.s32.totalorder %s27, 0
      %p81 = por %p79, %p80
      %p82 = scmp.ne.s32.totalorder %s70, %s71
      %p83 = scmp.eq.s32.totalorder %s28, 7
      %p84 = por %p82, %p83
      %p86 = scmp.ne.s32.totalorder %s71, %s85
      %p87 = scmp.eq.s32.totalorder %s28, 0
      %p88 = por %p86, %p87
      %s90 = sadd.s32 %s89, 1
      %p93 = scmp.eq.s32.totalorder %s22, 7
      %p94 = scmp.ne.s32.totalorder %s89, %s91
      %p95 = scmp.eq.s32.totalorder %s22, 0
      %p96 = por %p94, %p95
      %p97 = scmp.ne.s32.totalorder %s89, %s91
      %p98 = scmp.eq.s32.totalorder %s27, 7
      %p99 = por %p97, %p98
      %p100 = scmp.ne.s32.totalorder %s91, %s92
      %p101 = scmp.eq.s32.totalorder %s27, 0
      %p102 = por %p100, %p101
      %p103 = scmp.ne.s32.totalorder %s91, %s92
      %p104 = scmp.eq.s32.totalorder %s28, 7
      %p105 = por %p103, %p104
      %p107 = scmp.ne.s32.totalorder %s92, %s106
      %p108 = scmp.eq.s32.totalorder %s28, 0
      %p109 = por %p107, %p108
      %s110 = ssub.s32 %s30, %s37
      %p111 = scmp.eq.s32.totalorder %s110, 0
      %s113 = sadd.s32 %s112, 1
      %s114 = scalar_select %p111, %s112, %s113
      %p117 = pneg %p111
      %p118 = scmp.eq.s32.totalorder %s22, 7
      %p119 = por %p117, %p118
      %p120 = scmp.ne.s32.totalorder %s112, %s115
      %p121 = scmp.eq.s32.totalorder %s22, 0
      %p122 = por %p120, %p121
      %p123 = scmp.ne.s32.totalorder %s112, %s115
      %p124 = scmp.eq.s32.totalorder %s27, 7
      %p125 = por %p123, %p124
      %p126 = scmp.ne.s32.totalorder %s115, %s116
      %p127 = scmp.eq.s32.totalorder %s27, 0
      %p128 = por %p126, %p127
      %p129 = scmp.ne.s32.totalorder %s115, %s116
      %p130 = scmp.eq.s32.totalorder %s28, 7
      %p131 = por %p129, %p130
      %p133 = scmp.ne.s32.totalorder %s116, %s132
      %p134 = scmp.eq.s32.totalorder %s28, 0
      %p135 = por %p133, %p134
      %s136 = ssub.s32 %s30, %s37
      %p137 = scmp.eq.s32.totalorder %s136, 0
      %s139 = sadd.s32 %s138, 1
      %s140 = scalar_select %p137, %s138, %s139
      %p143 = pneg %p137
      %p144 = scmp.eq.s32.totalorder %s22, 7
      %p145 = por %p143, %p144
      %p146 = scmp.ne.s32.totalorder %s138, %s141
      %p147 = scmp.eq.s32.totalorder %s22, 0
      %p148 = por %p146, %p147
      %p149 = scmp.ne.s32.totalorder %s138, %s141
      %p150 = scmp.eq.s32.totalorder %s27, 7
      %p151 = por %p149, %p150
      %p152 = scmp.ne.s32.totalorder %s141, %s142
      %p153 = scmp.eq.s32.totalorder %s27, 0
      %p154 = por %p152, %p153
      %p155 = scmp.ne.s32.totalorder %s141, %s142
      %p156 = scmp.eq.s32.totalorder %s28, 7
      %p157 = por %p155, %p156
      %p159 = scmp.ne.s32.totalorder %s142, %s158
      %p160 = scmp.eq.s32.totalorder %s28, 0
      %p161 = por %p159, %p160
      %s162 = ssub.s32 %s30, %s37
      %p163 = scmp.eq.s32.totalorder %s162, 0
      %s165 = sadd.s32 %s164, 1
      %s166 = scalar_select %p163, %s164, %s165
      %p169 = pneg %p163
      %p170 = scmp.eq.s32.totalorder %s22, 7
      %p171 = por %p169, %p170
      %p172 = scmp.ne.s32.totalorder %s164, %s167
      %p173 = scmp.eq.s32.totalorder %s22, 0
      %p174 = por %p172, %p173
      %p175 = scmp.ne.s32.totalorder %s164, %s167
      %p176 = scmp.eq.s32.totalorder %s27, 7
      %p177 = por %p175, %p176
      %p178 = scmp.ne.s32.totalorder %s167, %s168
      %p179 = scmp.eq.s32.totalorder %s27, 0
      %p180 = por %p178, %p179
      %p181 = scmp.ne.s32.totalorder %s167, %s168
      %p182 = scmp.eq.s32.totalorder %s28, 7
      %p183 = por %p181, %p182
      %p185 = scmp.ne.s32.totalorder %s168, %s184
      %p186 = scmp.eq.s32.totalorder %s28, 0
      %p187 = por %p185, %p186
      %s188 = ssub.s32 %s30, %s37
      %p189 = scmp.eq.s32.totalorder %s188, 0
      %s191 = sadd.s32 %s190, 1
      %s192 = scalar_select %p189, %s190, %s191
      %p195 = pneg %p189
      %p196 = scmp.eq.s32.totalorder %s22, 7
      %p197 = por %p195, %p196
      %p198 = scmp.ne.s32.totalorder %s190, %s193
      %p199 = scmp.eq.s32.totalorder %s22, 0
      %p200 = por %p198, %p199
      %p201 = scmp.ne.s32.totalorder %s190, %s193
      %p202 = scmp.eq.s32.totalorder %s27, 7
      %p203 = por %p201, %p202
      %p204 = scmp.ne.s32.totalorder %s193, %s194
      %p205 = scmp.eq.s32.totalorder %s27, 0
      %p206 = por %p204, %p205
      %p207 = scmp.ne.s32.totalorder %s193, %s194
      %p208 = scmp.eq.s32.totalorder %s28, 7
      %p209 = por %p207, %p208
      %p211 = scmp.ne.s32.totalorder %s194, %s210
      %p212 = scmp.eq.s32.totalorder %s28, 0
      %p213 = por %p211, %p212
      %s215 = sadd.s32 %s214, 1
      %p218 = scmp.eq.s32.totalorder %s22, 7
      %p219 = scmp.ne.s32.totalorder %s214, %s216
      %p220 = scmp.eq.s32.totalorder %s22, 0
      %p221 = por %p219, %p220
      %p222 = scmp.ne.s32.totalorder %s214, %s216
      %p223 = scmp.eq.s32.totalorder %s27, 7
      %p224 = por %p222, %p223
      %p225 = scmp.ne.s32.totalorder %s216, %s217
      %p226 = scmp.eq.s32.totalorder %s27, 0
      %p227 = por %p225, %p226
      %p228 = scmp.ne.s32.totalorder %s216, %s217
      %p229 = scmp.eq.s32.totalorder %s28, 7
      %p230 = por %p228, %p229
      %p232 = scmp.ne.s32.totalorder %s217, %s231
      %p233 = scmp.eq.s32.totalorder %s28, 0
      %p234 = por %p232, %p233
      %s236 = sadd.s32 %s235, 1
      %p239 = scmp.eq.s32.totalorder %s22, 7
      %p240 = scmp.ne.s32.totalorder %s235, %s237
      %p241 = scmp.eq.s32.totalorder %s22, 0
      %p242 = por %p240, %p241
      %p243 = scmp.ne.s32.totalorder %s235, %s237
      %p244 = scmp.eq.s32.totalorder %s27, 7
      %p245 = por %p243, %p244
      %p246 = scmp.ne.s32.totalorder %s237, %s238
      %p247 = scmp.eq.s32.totalorder %s27, 0
      %p248 = por %p246, %p247
      %p249 = scmp.ne.s32.totalorder %s237, %s238
      %p250 = scmp.eq.s32.totalorder %s28, 7
      %p251 = por %p249, %p250
      %p253 = scmp.ne.s32.totalorder %s238, %s252
      %p254 = scmp.eq.s32.totalorder %s28, 0
      %p255 = por %p253, %p254
      %s256 = ssub.s32 %s29, %s41
      %p257 = scmp.eq.s32.totalorder %s256, 0
      %s259 = sadd.s32 %s258, 1
      %s260 = scalar_select %p257, %s258, %s259
      %p263 = pneg %p257
      %p264 = scmp.eq.s32.totalorder %s22, 7
      %p265 = por %p263, %p264
      %p266 = scmp.ne.s32.totalorder %s258, %s261
      %p267 = scmp.eq.s32.totalorder %s22, 0
      %p268 = por %p266, %p267
      %p269 = scmp.ne.s32.totalorder %s258, %s261
      %p270 = scmp.eq.s32.totalorder %s27, 7
      %p271 = por %p269, %p270
      %p272 = scmp.ne.s32.totalorder %s261, %s262
      %p273 = scmp.eq.s32.totalorder %s27, 0
      %p274 = por %p272, %p273
      %p275 = scmp.ne.s32.totalorder %s261, %s262
      %p276 = scmp.eq.s32.totalorder %s28, 7
      %p277 = por %p275, %p276
      %p279 = scmp.ne.s32.totalorder %s262, %s278
      %p280 = scmp.eq.s32.totalorder %s28, 0
      %p281 = por %p279, %p280
      %p282 = scmp.le.s32.totalorder 1, %s22
      %p283 = scmp.lt.s32.totalorder %s22, 9
      %p284 = pnand %p282, %p283
      %p285 = pneg %p284
      // Predicated region
      $region9: #{tpu_custom_call.1} parent=5 // pred_check
        _
      $region10: #{tpu_custom_call.1} parent=5 // pred_check_branch
        %287 = sbr.rel (%p284) target = $region12
      $region11: #{tpu_custom_call.1} parent=5 // pred_region
        %s288 = ssub.s32 %s22, 1
        // Predicated region
        $region13: #{tpu_custom_call.1} parent=11 // pred_check
          %p289 = pneg %p81
        $region14: #{tpu_custom_call.1} parent=11 // pred_check_branch
          %291 = sbr.rel (%p289) target = $region16
        $region15: #{tpu_custom_call.1} parent=11 // pred_region
          %s293 = ssub.s32 2048, 2048
          %294 = vsyncadd [#allocation7], %s293
          %s295 = sshll.u32 [#allocation6], 4
          %s296 = int_to_ptr.vmem [resolvable:$true] %s295
          %301 = dma.hbm_to_vmem [thread:$0]  %s1, 2048, %s296, [#allocation7], 128, 128, 8
        $region16: #{tpu_custom_call.1} parent=11 // pred_fallthru
          _
        // Predicated region
        $region17: #{tpu_custom_call.1} parent=11 // pred_check
          %p302 = pneg %p102
        $region18: #{tpu_custom_call.1} parent=11 // pred_check_branch
          %304 = sbr.rel (%p302) target = $region20
        $region19: #{tpu_custom_call.1} parent=11 // pred_region
          _
        $region20: #{tpu_custom_call.1} parent=11 // pred_fallthru
          _
        // Predicated region
        $region21: #{tpu_custom_call.1} parent=11 // pred_check
          %p305 = pneg %p227
        $region22: #{tpu_custom_call.1} parent=11 // pred_check_branch
          %307 = sbr.rel (%p305) target = $region24
        $region23: #{tpu_custom_call.1} parent=11 // pred_region
          %s309 = ssub.s32 2048, 2048
          %310 = vsyncadd [#allocation7], %s309
          %s311 = sshll.u32 [#allocation9], 4
          %s312 = int_to_ptr.vmem [resolvable:$true] %s311
          %317 = dma.hbm_to_vmem [thread:$0]  %s7, 2048, %s312, [#allocation7], 128, 128, 8
        $region24: #{tpu_custom_call.1} parent=11 // pred_fallthru
          _
        // Predicated region
        $region25: #{tpu_custom_call.1} parent=11 // pred_check
          %p318 = pneg %p248
        $region26: #{tpu_custom_call.1} parent=11 // pred_check_branch
          %320 = sbr.rel (%p318) target = $region28
        $region27: #{tpu_custom_call.1} parent=11 // pred_region
          _
        $region28: #{tpu_custom_call.1} parent=11 // pred_fallthru
          _
      $region12: #{tpu_custom_call.1} parent=5 // pred_fallthru
        _
      %p321 = scmp.lt.s32.totalorder %s22, 8
      // Predicated region
      $region29: #{tpu_custom_call.1} parent=5 // pred_check
        %p322 = pneg %p321
      $region30: #{tpu_custom_call.1} parent=5 // pred_check_branch
        %324 = sbr.rel (%p322) target = $region32
      $region31: #{tpu_custom_call.1} parent=5 // pred_region
        // Predicated region
        $region33: #{tpu_custom_call.1} parent=31 // pred_check
          %p325 = pneg %p54
        $region34: #{tpu_custom_call.1} parent=31 // pred_check_branch
          %327 = sbr.rel (%p325) target = $region36
        $region35: #{tpu_custom_call.1} parent=31 // pred_region
          %s328 = sand.u32 %s22, 1
          %s329 = scalar_lea.sflag [#allocation4], %s328
          %s330 = sand.u32 %s44, 1
          %s331 = smul.addr %s330, 64
          %s332 = scalar_lea.vmem [#allocation3], %s331
          %s334 = ssub.s32 1024, 1024
          %335 = vsyncadd %s329, %s334
          %s336 = smul.addr %s29, 128
          %s337 = scalar_lea.hbm %s0, %s336
          %s338 = sshll.u32 %s332, 4
          %s339 = int_to_ptr.vmem [resolvable:$true] %s338
          %344 = dma.hbm_to_vmem [thread:$0]  %s337, 1024, %s339, %s329, 256, 128, 8
        $region36: #{tpu_custom_call.1} parent=31 // pred_fallthru
          _
        // Predicated region
        $region37: #{tpu_custom_call.1} parent=31 // pred_check
          %p345 = pneg %p122
        $region38: #{tpu_custom_call.1} parent=31 // pred_check_branch
          %347 = sbr.rel (%p345) target = $region40
        $region39: #{tpu_custom_call.1} parent=31 // pred_region
          %s348 = sand.u32 %s22, 1
          %s349 = scalar_lea.sflag [#allocation4], %s348
          %s350 = sand.u32 %s112, 1
          %s351 = smul.addr %s350, 8
          %s352 = scalar_lea.vmem [#allocation8], %s351
          %s354 = ssub.s32 128, 128
          %355 = vsyncadd %s349, %s354
          %s356 = smul.addr %s30, 128
          %s357 = scalar_lea.hbm %s3, %s356
          %s359 = sshll.u32 %s352, 4
          %s360 = int_to_ptr.vmem [resolvable:$true] %s359
          %362 = dma.hbm_to_vmem [thread:$0]  %s357, 128, %s360, %s349
        $region40: #{tpu_custom_call.1} parent=31 // pred_fallthru
          _
        // Predicated region
        $region41: #{tpu_custom_call.1} parent=31 // pred_check
          %p363 = pneg %p148
        $region42: #{tpu_custom_call.1} parent=31 // pred_check_branch
          %365 = sbr.rel (%p363) target = $region44
        $region43: #{tpu_custom_call.1} parent=31 // pred_region
          %p366 = scmp.lt.s32.totalorder %s30, 3
          %s367 = scalar_select %p366, %s30, 3
          %s368 = scalar_lea.vmem %s4, %s367
        $region44: #{tpu_custom_call.1} parent=31 // pred_fallthru
          _
        // Predicated region
        $region45: #{tpu_custom_call.1} parent=31 // pred_check
          %p369 = pneg %p174
        $region46: #{tpu_custom_call.1} parent=31 // pred_check_branch
          %371 = sbr.rel (%p369) target = $region48
        $region47: #{tpu_custom_call.1} parent=31 // pred_region
          %p372 = scmp.lt.s32.totalorder %s30, 3
          %s373 = scalar_select %p372, %s30, 3
          %s374 = scalar_lea.vmem %s5, %s373
        $region48: #{tpu_custom_call.1} parent=31 // pred_fallthru
          _
        // Predicated region
        $region49: #{tpu_custom_call.1} parent=31 // pred_check
          %p375 = pneg %p200
        $region50: #{tpu_custom_call.1} parent=31 // pred_check_branch
          %377 = sbr.rel (%p375) target = $region52
        $region51: #{tpu_custom_call.1} parent=31 // pred_region
          %p378 = scmp.lt.s32.totalorder %s30, 3
          %s379 = scalar_select %p378, %s30, 3
          %s380 = scalar_lea.vmem %s6, %s379
        $region52: #{tpu_custom_call.1} parent=31 // pred_fallthru
          _
      $region32: #{tpu_custom_call.1} parent=5 // pred_fallthru
        _
      %p381 = scmp.le.s32.totalorder 1, %s22
      %p382 = scmp.lt.s32.totalorder %s22, 9
      %p383 = pnand %p381, %p382
      %p384 = pneg %p383
      // Predicated region
      $region53: #{tpu_custom_call.1} parent=5 // pred_check
        _
      $region54: #{tpu_custom_call.1} parent=5 // pred_check_branch
        %386 = sbr.rel (%p383) target = $region56
      $region55: #{tpu_custom_call.1} parent=5 // pred_region
        %s387 = ssub.s32 %s22, 1
        %s388 = sand.u32 %s27, 1
        %s389 = scalar_lea.sflag [#allocation4], %s388
        %s390 = sand.u32 %s47, 1
        %s391 = smul.addr %s390, 64
        %s392 = scalar_lea.vmem [#allocation3], %s391
        // Predicated region
        $region57: #{tpu_custom_call.1} parent=55 // pred_check
          %p393 = pneg %p60
        $region58: #{tpu_custom_call.1} parent=55 // pred_check_branch
          %395 = sbr.rel (%p393) target = $region60
        $region59: #{tpu_custom_call.1} parent=55 // pred_region
          %396 = dma.done %s389, 1024
        $region60: #{tpu_custom_call.1} parent=55 // pred_fallthru
          _
        // Predicated region
        $region61: #{tpu_custom_call.1} parent=55 // pred_check
          %p397 = pneg %p81
        $region62: #{tpu_custom_call.1} parent=55 // pred_check_branch
          %399 = sbr.rel (%p397) target = $region64
        $region63: #{tpu_custom_call.1} parent=55 // pred_region
          %400 = dma.done [#allocation7], 2048
        $region64: #{tpu_custom_call.1} parent=55 // pred_fallthru
          _
        %s401 = sand.u32 %s27, 1
        %s402 = scalar_lea.sflag [#allocation4], %s401
        %s403 = sand.u32 %s115, 1
        %s404 = smul.addr %s403, 8
        %s405 = scalar_lea.vmem [#allocation8], %s404
        // Predicated region
        $region65: #{tpu_custom_call.1} parent=55 // pred_check
          %p406 = pneg %p128
        $region66: #{tpu_custom_call.1} parent=55 // pred_check_branch
          %408 = sbr.rel (%p406) target = $region68
        $region67: #{tpu_custom_call.1} parent=55 // pred_region
          %409 = dma.done %s402, 128
        $region68: #{tpu_custom_call.1} parent=55 // pred_fallthru
          _
        // Predicated region
        $region69: #{tpu_custom_call.1} parent=55 // pred_check
          %p410 = pneg %p227
        $region70: #{tpu_custom_call.1} parent=55 // pred_check_branch
          %412 = sbr.rel (%p410) target = $region72
        $region71: #{tpu_custom_call.1} parent=55 // pred_region
          %413 = dma.done [#allocation7], 2048
        $region72: #{tpu_custom_call.1} parent=55 // pred_fallthru
          _
        %s414 = sand.u32 %s27, 1
        %s415 = scalar_lea.sflag [#allocation4], %s414
        %s416 = sand.u32 %s47, 1
        %s417 = smul.addr %s416, 64
        %s418 = scalar_lea.vmem [#allocation3], %s417
        %p419 = pneg %p60
        %p420 = pneg %p57
        %p421 = pneg %p81
        %p422 = pneg %p78
        %p423 = pneg %p102
        %p424 = pneg %p99
        %s425 = sand.u32 %s27, 1
        %s426 = scalar_lea.sflag [#allocation4], %s425
        %s427 = sand.u32 %s115, 1
        %s428 = smul.addr %s427, 8
        %s429 = scalar_lea.vmem [#allocation8], %s428
        %p430 = pneg %p128
        %p431 = pneg %p125
        %p432 = scmp.lt.s32.totalorder %s32, 3
        %s433 = scalar_select %p432, %s32, 3
        %s434 = scalar_lea.vmem %s4, %s433
        %p435 = pneg %p154
        %p436 = pneg %p151
        %p437 = scmp.lt.s32.totalorder %s32, 3
        %s438 = scalar_select %p437, %s32, 3
        %s439 = scalar_lea.vmem %s5, %s438
        %p440 = pneg %p180
        %p441 = pneg %p177
        %p442 = scmp.lt.s32.totalorder %s32, 3
        %s443 = scalar_select %p442, %s32, 3
        %s444 = scalar_lea.vmem %s6, %s443
        %p445 = pneg %p206
        %p446 = pneg %p203
        %p447 = pneg %p227
        %p448 = pneg %p224
        %p449 = pneg %p248
        %p450 = pneg %p245
        %p451 = pneg %p274
        %p452 = pneg %p271
        %s453 = sand.u32 %s261, 1
        %s454 = scalar_lea.sflag [#allocation5], %s453
        %s455 = sand.u32 %s261, 1
        %s456 = smul.addr %s455, 8
        %s457 = scalar_lea.vmem [#allocation10], %s456
        %p458 = scmp.lt.s32.totalorder %s32, 3
        %s459 = scalar_select %p458, %s32, 3
        %s460 = scalar_lea.vmem %s4, %s459
        %p461 = scmp.lt.s32.totalorder %s32, 3
        %s462 = scalar_select %p461, %s32, 3
        %s463 = scalar_lea.vmem %s5, %s462
        %p464 = scmp.lt.s32.totalorder %s32, 3
        %s465 = scalar_select %p464, %s32, 3
        %s466 = scalar_lea.vmem %s6, %s465
        %p467 = scmp.eq.s32.totalorder %s32, 0
        // Predicated region
        $region73: #{tpu_custom_call.1} parent=55 // pred_check
          %p468 = pneg %p467
        $region74: #{tpu_custom_call.1} parent=55 // pred_check_branch
          %470 = sbr.rel (%p468) target = $region76
        $region75: #{tpu_custom_call.1} parent=55 // pred_region
          %v471 = vld [vmem:[%s392] sm:$0xff]
          %v472 = vld [vmem:[%s392 + $0x8] sm:$0xff]
          %v473 = vld [vmem:[%s392 + $0x10] sm:$0xff]
          %v474 = vld [vmem:[%s392 + $0x18] sm:$0xff]
          %v475 = vld [vmem:[%s392 + $0x20] sm:$0xff]
          %v476 = vld [vmem:[%s392 + $0x28] sm:$0xff]
          %v477 = vld [vmem:[%s392 + $0x30] sm:$0xff]
          %v478 = vld [vmem:[%s392 + $0x38] sm:$0xff]
          %v479 = vld [vmem:[#allocation6] sm:$0xff]
          %v480 = vld [vmem:[#allocation6 + $0x8] sm:$0xff]
          %v481 = vld [vmem:[#allocation6 + $0x10] sm:$0xff]
          %v482 = vld [vmem:[#allocation6 + $0x18] sm:$0xff]
          %v483 = vld [vmem:[#allocation6 + $0x20] sm:$0xff]
          %v484 = vld [vmem:[#allocation6 + $0x28] sm:$0xff]
          %v485 = vld [vmem:[#allocation6 + $0x30] sm:$0xff]
          %v486 = vld [vmem:[#allocation6 + $0x38] sm:$0xff]
          %v487 = vld [vmem:[#allocation6 + $0x40] sm:$0xff]
          %v488 = vld [vmem:[#allocation6 + $0x48] sm:$0xff]
          %v489 = vld [vmem:[#allocation6 + $0x50] sm:$0xff]
          %v490 = vld [vmem:[#allocation6 + $0x58] sm:$0xff]
          %v491 = vld [vmem:[#allocation6 + $0x60] sm:$0xff]
          %v492 = vld [vmem:[#allocation6 + $0x68] sm:$0xff]
          %v493 = vld [vmem:[#allocation6 + $0x70] sm:$0xff]
          %v494 = vld [vmem:[#allocation6 + $0x78] sm:$0xff]
          %v495 = vld [vmem:[%s2] sm:$0x1]
          %v497 = vlaneseq
          %v498 = vshrl.u32 %v497, 7
          %v499 = vsub.s32 0, %v498
          %v500 = vrot.slane %v495, %v499
          %502 = vmatprep.subr.mxu0 0.0
          %v503 = vand.u32 %v479, 4294901760
          %504 = vmatpush1.msra.mxu0 %v503
          %505 = vmatprep.subr.mxu0 0.0
          %v506 = vand.u32 %v480, 4294901760
          %507 = vmatpush1.msra.mxu0 %v506
          %508 = vmatprep.subr.mxu0 0.0
          %v509 = vand.u32 %v481, 4294901760
          %510 = vmatpush1.msra.mxu0 %v509
          %511 = vmatprep.subr.mxu0 0.0
          %v512 = vand.u32 %v482, 4294901760
          %513 = vmatpush1.msra.mxu0 %v512
          %514 = vmatprep.subr.mxu0 0.0
          %v515 = vand.u32 %v483, 4294901760
          %516 = vmatpush1.msra.mxu0 %v515
          %517 = vmatprep.subr.mxu0 0.0
          %v518 = vand.u32 %v484, 4294901760
          %519 = vmatpush1.msra.mxu0 %v518
          %520 = vmatprep.subr.mxu0 0.0
          %v521 = vand.u32 %v485, 4294901760
          %522 = vmatpush1.msra.mxu0 %v521
          %523 = vmatprep.subr.mxu0 0.0
          %v524 = vand.u32 %v486, 4294901760
          %525 = vmatpush1.msra.mxu0 %v524
          %526 = vmatprep.subr.mxu0 0.0
          %v527 = vand.u32 %v487, 4294901760
          %528 = vmatpush1.msra.mxu0 %v527
          %529 = vmatprep.subr.mxu0 0.0
          %v530 = vand.u32 %v488, 4294901760
          %531 = vmatpush1.msra.mxu0 %v530
          %532 = vmatprep.subr.mxu0 0.0
          %v533 = vand.u32 %v489, 4294901760
          %534 = vmatpush1.msra.mxu0 %v533
          %535 = vmatprep.subr.mxu0 0.0
          %v536 = vand.u32 %v490, 4294901760
          %537 = vmatpush1.msra.mxu0 %v536
          %538 = vmatprep.subr.mxu0 0.0
          %v539 = vand.u32 %v491, 4294901760
          %540 = vmatpush1.msra.mxu0 %v539
          %541 = vmatprep.subr.mxu0 0.0
          %v542 = vand.u32 %v492, 4294901760
          %543 = vmatpush1.msra.mxu0 %v542
          %544 = vmatprep.subr.mxu0 0.0
          %v545 = vand.u32 %v493, 4294901760
          %546 = vmatpush1.msra.mxu0 %v545
          %547 = vmatprep.subr.mxu0 0.0
          %v548 = vand.u32 %v494, 4294901760
          %549 = vmatpush1.msra.mxu0 %v548
          %550 = vmatprep.subr.mxu0 0.0
          %551 = vmatpush1.msra.mxu0 0.0
          %552 = vmatprep.subr.mxu0 0.0
          %553 = vmatpush1.msra.mxu0 0.0
          %554 = vmatprep.subr.mxu0 0.0
          %555 = vmatpush1.msra.mxu0 0.0
          %556 = vmatprep.subr.mxu0 0.0
          %557 = vmatpush1.msra.mxu0 0.0
          %558 = vmatprep.subr.mxu0 0.0
          %559 = vmatpush1.msra.mxu0 0.0
          %560 = vmatprep.subr.mxu0 0.0
          %561 = vmatpush1.msra.mxu0 0.0
          %562 = vmatprep.subr.mxu0 0.0
          %563 = vmatpush1.msra.mxu0 0.0
          %564 = vmatprep.subr.mxu0 0.0
          %565 = vmatpush1.msra.mxu0 0.0
          %566 = vmatprep.subr.mxu0 0.0
          %567 = vmatpush1.msra.mxu0 0.0
          %568 = vmatprep.subr.mxu0 0.0
          %569 = vmatpush1.msra.mxu0 0.0
          %570 = vmatprep.subr.mxu0 0.0
          %571 = vmatpush1.msra.mxu0 0.0
          %572 = vmatprep.subr.mxu0 0.0
          %573 = vmatpush1.msra.mxu0 0.0
          %574 = vmatprep.subr.mxu0 0.0
          %575 = vmatpush1.msra.mxu0 0.0
          %576 = vmatprep.subr.mxu0 0.0
          %577 = vmatpush1.msra.mxu0 0.0
          %578 = vmatprep.subr.mxu0 0.0
          %579 = vmatpush1.msra.mxu0 0.0
          %580 = vmatprep.subr.mxu0 0.0
          %581 = vmatpush1.msra.mxu0 0.0
          %582 = vmatprep.mubr.f32.mxu0 0.0
          %v583 = vand.u32 %v471, 4294901760
          %v584 = vsub.f32 %v471, %v583
          %v585 = vand.u32 %v584, 4294901760
          %v586 = vsub.f32 %v584, %v585
          %v587 = vand.u32 %v586, 4294901760
          %588 = vmatmul.mubr.f32.gmra.mrb[0].mxu0 %v587
          %v589 = vpop.f32.mrb[0].mxu0
          %v590 = vadd.f32 %v500, %v589
          %v591 = vpop.f32.mrb[0].mxu0
          %592 = vmatprep.mubr.f32.mxu0 0.0
          %v593 = vand.u32 %v472, 4294901760
          %v594 = vsub.f32 %v472, %v593
          %v595 = vand.u32 %v594, 4294901760
          %v596 = vsub.f32 %v594, %v595
          %v597 = vand.u32 %v596, 4294901760
          %598 = vmatmul.mubr.f32.gmra.mrb[0].mxu0 %v597
          %v599 = vpop.f32.mrb[0].mxu0
          %v600 = vadd.f32 %v500, %v599
          %v601 = vpop.f32.mrb[0].mxu0
          %602 = vmatprep.mubr.f32.mxu0 0.0
          %v603 = vand.u32 %v473, 4294901760
          %v604 = vsub.f32 %v473, %v603
          %v605 = vand.u32 %v604, 4294901760
          %v606 = vsub.f32 %v604, %v605
          %v607 = vand.u32 %v606, 4294901760
          %608 = vmatmul.mubr.f32.gmra.mrb[0].mxu0 %v607
          %v609 = vpop.f32.mrb[0].mxu0
          %v610 = vadd.f32 %v500, %v609
          %v611 = vpop.f32.mrb[0].mxu0
          %612 = vmatprep.mubr.f32.mxu0 0.0
          %v613 = vand.u32 %v474, 4294901760
          %v614 = vsub.f32 %v474, %v613
          %v615 = vand.u32 %v614, 4294901760
          %v616 = vsub.f32 %v614, %v615
          %v617 = vand.u32 %v616, 4294901760
          %618 = vmatmul.mubr.f32.gmra.mrb[0].mxu0 %v617
          %v619 = vpop.f32.mrb[0].mxu0
          %v620 = vadd.f32 %v500, %v619
          %v621 = vpop.f32.mrb[0].mxu0
          %622 = vmatprep.mubr.f32.mxu0 0.0
          %v623 = vand.u32 %v475, 4294901760
          %v624 = vsub.f32 %v475, %v623
          %v625 = vand.u32 %v624, 4294901760
          %v626 = vsub.f32 %v624, %v625
          %v627 = vand.u32 %v626, 4294901760
          %628 = vmatmul.mubr.f32.gmra.mrb[0].mxu0 %v627
          %v629 = vpop.f32.mrb[0].mxu0
          %v630 = vadd.f32 %v500, %v629
          %v631 = vpop.f32.mrb[0].mxu0
          %632 = vmatprep.mubr.f32.mxu0 0.0
          %v633 = vand.u32 %v476, 4294901760
          %v634 = vsub.f32 %v476, %v633
          %v635 = vand.u32 %v634, 4294901760
          %v636 = vsub.f32 %v634, %v635
          %v637 = vand.u32 %v636, 4294901760
          %638 = vmatmul.mubr.f32.gmra.mrb[0].mxu0 %v637
          %v639 = vpop.f32.mrb[0].mxu0
          %v640 = vadd.f32 %v500, %v639
          %v641 = vpop.f32.mrb[0].mxu0
          %642 = vmatprep.mubr.f32.mxu0 0.0
          %v643 = vand.u32 %v477, 4294901760
          %v644 = vsub.f32 %v477, %v643
          %v645 = vand.u32 %v644, 4294901760
          %v646 = vsub.f32 %v644, %v645
          %v647 = vand.u32 %v646, 4294901760
          %648 = vmatmul.mubr.f32.gmra.mrb[0].mxu0 %v647
          %v649 = vpop.f32.mrb[0].mxu0
          %v650 = vadd.f32 %v500, %v649
          %v651 = vpop.f32.mrb[0].mxu0
          %652 = vmatprep.mubr.f32.mxu0 0.0
          %v653 = vand.u32 %v478, 4294901760
          %v654 = vsub.f32 %v478, %v653
          %v655 = vand.u32 %v654, 4294901760
          %v656 = vsub.f32 %v654, %v655
          %v657 = vand.u32 %v656, 4294901760
          %658 = vmatmul.mubr.f32.gmra.mrb[0].mxu0 %v657
          %v659 = vpop.f32.mrb[0].mxu0
          %v660 = vadd.f32 %v500, %v659
          %v661 = vpop.f32.mrb[0].mxu0
          %662 = vdwg.mxu0
          %663 = vmatprep.subr.mxu0 0.0
          %v664 = vand.u32 %v479, 4294901760
          %v665 = vsub.f32 %v479, %v664
          %v666 = vand.u32 %v665, 4294901760
          %v667 = vsub.f32 %v665, %v666
          %v668 = vand.u32 %v667, 4294901760
          %669 = vmatpush1.msra.mxu0 %v668
          %670 = vmatprep.subr.mxu0 0.0
          %v671 = vand.u32 %v480, 4294901760
          %v672 = vsub.f32 %v480, %v671
          %v673 = vand.u32 %v672, 4294901760
          %v674 = vsub.f32 %v672, %v673
          %v675 = vand.u32 %v674, 4294901760
          %676 = vmatpush1.msra.mxu0 %v675
          %677 = vmatprep.subr.mxu0 0.0
          %v678 = vand.u32 %v481, 4294901760
          %v679 = vsub.f32 %v481, %v678
          %v680 = vand.u32 %v679, 4294901760
          %v681 = vsub.f32 %v679, %v680
          %v682 = vand.u32 %v681, 4294901760
          %683 = vmatpush1.msra.mxu0 %v682
          %684 = vmatprep.subr.mxu0 0.0
          %v685 = vand.u32 %v482, 4294901760
          %v686 = vsub.f32 %v482, %v685
          %v687 = vand.u32 %v686, 4294901760
          %v688 = vsub.f32 %v686, %v687
          %v689 = vand.u32 %v688, 4294901760
          %690 = vmatpush1.msra.mxu0 %v689
          %691 = vmatprep.subr.mxu0 0.0
          %v692 = vand.u32 %v483, 4294901760
          %v693 = vsub.f32 %v483, %v692
          %v694 = vand.u32 %v693, 4294901760
          %v695 = vsub.f32 %v693, %v694
          %v696 = vand.u32 %v695, 4294901760
          %697 = vmatpush1.msra.mxu0 %v696
          %698 = vmatprep.subr.mxu0 0.0
          %v699 = vand.u32 %v484, 4294901760
          %v700 = vsub.f32 %v484, %v699
          %v701 = vand.u32 %v700, 4294901760
          %v702 = vsub.f32 %v700, %v701
          %v703 = vand.u32 %v702, 4294901760
          %704 = vmatpush1.msra.mxu0 %v703
          %705 = vmatprep.subr.mxu0 0.0
          %v706 = vand.u32 %v485, 4294901760
          %v707 = vsub.f32 %v485, %v706
          %v708 = vand.u32 %v707, 4294901760
          %v709 = vsub.f32 %v707, %v708
          %v710 = vand.u32 %v709, 4294901760
          %711 = vmatpush1.msra.mxu0 %v710
          %712 = vmatprep.subr.mxu0 0.0
          %v713 = vand.u32 %v486, 4294901760
          %v714 = vsub.f32 %v486, %v713
          %v715 = vand.u32 %v714, 4294901760
          %v716 = vsub.f32 %v714, %v715
          %v717 = vand.u32 %v716, 4294901760
          %718 = vmatpush1.msra.mxu0 %v717
          %719 = vmatprep.subr.mxu0 0.0
          %v720 = vand.u32 %v487, 4294901760
          %v721 = vsub.f32 %v487, %v720
          %v722 = vand.u32 %v721, 4294901760
          %v723 = vsub.f32 %v721, %v722
          %v724 = vand.u32 %v723, 4294901760
          %725 = vmatpush1.msra.mxu0 %v724
          %726 = vmatprep.subr.mxu0 0.0
          %v727 = vand.u32 %v488, 4294901760
          %v728 = vsub.f32 %v488, %v727
          %v729 = vand.u32 %v728, 4294901760
          %v730 = vsub.f32 %v728, %v729
          %v731 = vand.u32 %v730, 4294901760
          %732 = vmatpush1.msra.mxu0 %v731
          %733 = vmatprep.subr.mxu0 0.0
          %v734 = vand.u32 %v489, 4294901760
          %v735 = vsub.f32 %v489, %v734
          %v736 = vand.u32 %v735, 4294901760
          %v737 = vsub.f32 %v735, %v736
          %v738 = vand.u32 %v737, 4294901760
          %739 = vmatpush1.msra.mxu0 %v738
          %740 = vmatprep.subr.mxu0 0.0
          %v741 = vand.u32 %v490, 4294901760
          %v742 = vsub.f32 %v490, %v741
          %v743 = vand.u32 %v742, 4294901760
          %v744 = vsub.f32 %v742, %v743
          %v745 = vand.u32 %v744, 4294901760
          %746 = vmatpush1.msra.mxu0 %v745
          %747 = vmatprep.subr.mxu0 0.0
          %v748 = vand.u32 %v491, 4294901760
          %v749 = vsub.f32 %v491, %v748
          %v750 = vand.u32 %v749, 4294901760
          %v751 = vsub.f32 %v749, %v750
          %v752 = vand.u32 %v751, 4294901760
          %753 = vmatpush1.msra.mxu0 %v752
          %754 = vmatprep.subr.mxu0 0.0
          %v755 = vand.u32 %v492, 4294901760
          %v756 = vsub.f32 %v492, %v755
          %v757 = vand.u32 %v756, 4294901760
          %v758 = vsub.f32 %v756, %v757
          %v759 = vand.u32 %v758, 4294901760
          %760 = vmatpush1.msra.mxu0 %v759
          %761 = vmatprep.subr.mxu0 0.0
          %v762 = vand.u32 %v493, 4294901760
          %v763 = vsub.f32 %v493, %v762
          %v764 = vand.u32 %v763, 4294901760
          %v765 = vsub.f32 %v763, %v764
          %v766 = vand.u32 %v765, 4294901760
          %767 = vmatpush1.msra.mxu0 %v766
          %768 = vmatprep.subr.mxu0 0.0
          %v769 = vand.u32 %v494, 4294901760
          %v770 = vsub.f32 %v494, %v769
          %v771 = vand.u32 %v770, 4294901760
          %v772 = vsub.f32 %v770, %v771
          %v773 = vand.u32 %v772, 4294901760
          %774 = vmatpush1.msra.mxu0 %v773
          %775 = vmatprep.subr.mxu0 0.0
          %776 = vmatpush1.msra.mxu0 0.0
          %777 = vmatprep.subr.mxu0 0.0
          %778 = vmatpush1.msra.mxu0 0.0
          %779 = vmatprep.subr.mxu0 0.0
          %780 = vmatpush1.msra.mxu0 0.0
          %781 = vmatprep.subr.mxu0 0.0
          %782 = vmatpush1.msra.mxu0 0.0
          %783 = vmatprep.subr.mxu0 0.0
          %784 = vmatpush1.msra.mxu0 0.0
          %785 = vmatprep.subr.mxu0 0.0
          %786 = vmatpush1.msra.mxu0 0.0
          %787 = vmatprep.subr.mxu0 0.0
          %788 = vmatpush1.msra.mxu0 0.0
          %789 = vmatprep.subr.mxu0 0.0
          %790 = vmatpush1.msra.mxu0 0.0
          %791 = vmatprep.subr.mxu0 0.0
          %792 = vmatpush1.msra.mxu0 0.0
          %793 = vmatprep.subr.mxu0 0.0
          %794 = vmatpush1.msra.mxu0 0.0
          %795 = vmatprep.subr.mxu0 0.0
          %796 = vmatpush1.msra.mxu0 0.0
          %797 = vmatprep.subr.mxu0 0.0
          %798 = vmatpush1.msra.mxu0 0.0
          %799 = vmatprep.subr.mxu0 0.0
          %800 = vmatpush1.msra.mxu0 0.0
          %801 = vmatprep.subr.mxu0 0.0
          %802 = vmatpush1.msra.mxu0 0.0
          %803 = vmatprep.subr.mxu0 0.0
          %804 = vmatpush1.msra.mxu0 0.0
          %805 = vmatprep.subr.mxu0 0.0
          %806 = vmatpush1.msra.mxu0 0.0
          %807 = vmatprep.mubr.f32.mxu0 0.0
          %v808 = vand.u32 %v471, 4294901760
          %809 = vmatmul.mubr.f32.gmra.mrb[0].mxu0 %v808
          %v810 = vpop.f32.mrb[0].mxu0
          %v811 = vadd.f32 %v590, %v810
          %v812 = vpop.f32.mrb[0].mxu0
          %813 = vmatprep.mubr.f32.mxu0 0.0
          %v814 = vand.u32 %v472, 4294901760
          %815 = vmatmul.mubr.f32.gmra.mrb[0].mxu0 %v814
          %v816 = vpop.f32.mrb[0].mxu0
          %v817 = vadd.f32 %v600, %v816
          %v818 = vpop.f32.mrb[0].mxu0
          %819 = vmatprep.mubr.f32.mxu0 0.0
          %v820 = vand.u32 %v473, 4294901760
          %821 = vmatmul.mubr.f32.gmra.mrb[0].mxu0 %v820
          %v822 = vpop.f32.mrb[0].mxu0
          %v823 = vadd.f32 %v610, %v822
          %v824 = vpop.f32.mrb[0].mxu0
          %825 = vmatprep.mubr.f32.mxu0 0.0
          %v826 = vand.u32 %v474, 4294901760
          %827 = vmatmul.mubr.f32.gmra.mrb[0].mxu0 %v826
          %v828 = vpop.f32.mrb[0].mxu0
          %v829 = vadd.f32 %v620, %v828
          %v830 = vpop.f32.mrb[0].mxu0
          %831 = vmatprep.mubr.f32.mxu0 0.0
          %v832 = vand.u32 %v475, 4294901760
          %833 = vmatmul.mubr.f32.gmra.mrb[0].mxu0 %v832
          %v834 = vpop.f32.mrb[0].mxu0
          %v835 = vadd.f32 %v630, %v834
          %v836 = vpop.f32.mrb[0].mxu0
          %837 = vmatprep.mubr.f32.mxu0 0.0
          %v838 = vand.u32 %v476, 4294901760
          %839 = vmatmul.mubr.f32.gmra.mrb[0].mxu0 %v838
          %v840 = vpop.f32.mrb[0].mxu0
          %v841 = vadd.f32 %v640, %v840
          %v842 = vpop.f32.mrb[0].mxu0
          %843 = vmatprep.mubr.f32.mxu0 0.0
          %v844 = vand.u32 %v477, 4294901760
          %845 = vmatmul.mubr.f32.gmra.mrb[0].mxu0 %v844
          %v846 = vpop.f32.mrb[0].mxu0
          %v847 = vadd.f32 %v650, %v846
          %v848 = vpop.f32.mrb[0].mxu0
          %849 = vmatprep.mubr.f32.mxu0 0.0
          %v850 = vand.u32 %v478, 4294901760
          %851 = vmatmul.mubr.f32.gmra.mrb[0].mxu0 %v850
          %v852 = vpop.f32.mrb[0].mxu0
          %v853 = vadd.f32 %v660, %v852
          %v854 = vpop.f32.mrb[0].mxu0
          %855 = vdwg.mxu0
          %856 = vmatprep.subr.mxu0 0.0
          %v857 = vand.u32 %v479, 4294901760
          %v858 = vsub.f32 %v479, %v857
          %859 = vmatpush1.msra.mxu0 %v858
          %860 = vmatprep.subr.mxu0 0.0
          %v861 = vand.u32 %v480, 4294901760
          %v862 = vsub.f32 %v480, %v861
          %863 = vmatpush1.msra.mxu0 %v862
          %864 = vmatprep.subr.mxu0 0.0
          %v865 = vand.u32 %v481, 4294901760
          %v866 = vsub.f32 %v481, %v865
          %867 = vmatpush1.msra.mxu0 %v866
          %868 = vmatprep.subr.mxu0 0.0
          %v869 = vand.u32 %v482, 4294901760
          %v870 = vsub.f32 %v482, %v869
          %871 = vmatpush1.msra.mxu0 %v870
          %872 = vmatprep.subr.mxu0 0.0
          %v873 = vand.u32 %v483, 4294901760
          %v874 = vsub.f32 %v483, %v873
          %875 = vmatpush1.msra.mxu0 %v874
          %876 = vmatprep.subr.mxu0 0.0
          %v877 = vand.u32 %v484, 4294901760
          %v878 = vsub.f32 %v484, %v877
          %879 = vmatpush1.msra.mxu0 %v878
          %880 = vmatprep.subr.mxu0 0.0
          %v881 = vand.u32 %v485, 4294901760
          %v882 = vsub.f32 %v485, %v881
          %883 = vmatpush1.msra.mxu0 %v882
          %884 = vmatprep.subr.mxu0 0.0
          %v885 = vand.u32 %v486, 4294901760
          %v886 = vsub.f32 %v486, %v885
          %887 = vmatpush1.msra.mxu0 %v886
          %888 = vmatprep.subr.mxu0 0.0
          %v889 = vand.u32 %v487, 4294901760
          %v890 = vsub.f32 %v487, %v889
          %891 = vmatpush1.msra.mxu0 %v890
          %892 = vmatprep.subr.mxu0 0.0
          %v893 = vand.u32 %v488, 4294901760
          %v894 = vsub.f32 %v488, %v893
          %895 = vmatpush1.msra.mxu0 %v894
          %896 = vmatprep.subr.mxu0 0.0
          %v897 = vand.u32 %v489, 4294901760
          %v898 = vsub.f32 %v489, %v897
          %899 = vmatpush1.msra.mxu0 %v898
          %900 = vmatprep.subr.mxu0 0.0
          %v901 = vand.u32 %v490, 4294901760
          %v902 = vsub.f32 %v490, %v901
          %903 = vmatpush1.msra.mxu0 %v902
          %904 = vmatprep.subr.mxu0 0.0
          %v905 = vand.u32 %v491, 4294901760
          %v906 = vsub.f32 %v491, %v905
          %907 = vmatpush1.msra.mxu0 %v906
          %908 = vmatprep.subr.mxu0 0.0
          %v909 = vand.u32 %v492, 4294901760
          %v910 = vsub.f32 %v492, %v909
          %911 = vmatpush1.msra.mxu0 %v910
          %912 = vmatprep.subr.mxu0 0.0
          %v913 = vand.u32 %v493, 4294901760
          %v914 = vsub.f32 %v493, %v913
          %915 = vmatpush1.msra.mxu0 %v914
          %916 = vmatprep.subr.mxu0 0.0
          %v917 = vand.u32 %v494, 4294901760
          %v918 = vsub.f32 %v494, %v917
          %919 = vmatpush1.msra.mxu0 %v918
          %920 = vmatprep.subr.mxu0 0.0
          %921 = vmatpush1.msra.mxu0 0.0
          %922 = vmatprep.subr.mxu0 0.0
          %923 = vmatpush1.msra.mxu0 0.0
          %924 = vmatprep.subr.mxu0 0.0
          %925 = vmatpush1.msra.mxu0 0.0
          %926 = vmatprep.subr.mxu0 0.0
          %927 = vmatpush1.msra.mxu0 0.0
          %928 = vmatprep.subr.mxu0 0.0
          %929 = vmatpush1.msra.mxu0 0.0
          %930 = vmatprep.subr.mxu0 0.0
          %931 = vmatpush1.msra.mxu0 0.0
          %932 = vmatprep.subr.mxu0 0.0
          %933 = vmatpush1.msra.mxu0 0.0
          %934 = vmatprep.subr.mxu0 0.0
          %935 = vmatpush1.msra.mxu0 0.0
          %936 = vmatprep.subr.mxu0 0.0
          %937 = vmatpush1.msra.mxu0 0.0
          %938 = vmatprep.subr.mxu0 0.0
          %939 = vmatpush1.msra.mxu0 0.0
          %940 = vmatprep.subr.mxu0 0.0
          %941 = vmatpush1.msra.mxu0 0.0
          %942 = vmatprep.subr.mxu0 0.0
          %943 = vmatpush1.msra.mxu0 0.0
          %944 = vmatprep.subr.mxu0 0.0
          %945 = vmatpush1.msra.mxu0 0.0
          %946 = vmatprep.subr.mxu0 0.0
          %947 = vmatpush1.msra.mxu0 0.0
          %948 = vmatprep.subr.mxu0 0.0
          %949 = vmatpush1.msra.mxu0 0.0
          %950 = vmatprep.subr.mxu0 0.0
          %951 = vmatpush1.msra.mxu0 0.0
          %952 = vmatprep.mubr.f32.mxu0 0.0
          %v953 = vand.u32 %v471, 4294901760
          %v954 = vsub.f32 %v471, %v953
          %955 = vmatmul.mubr.f32.gmra.mrb[0].mxu0 %v954
          %v956 = vpop.f32.mrb[0].mxu0
          %v957 = vadd.f32 %v811, %v956
          %v958 = vpop.f32.mrb[0].mxu0
          %959 = vmatprep.mubr.f32.mxu0 0.0
          %v960 = vand.u32 %v472, 4294901760
          %v961 = vsub.f32 %v472, %v960
          %962 = vmatmul.mubr.f32.gmra.mrb[0].mxu0 %v961
          %v963 = vpop.f32.mrb[0].mxu0
          %v964 = vadd.f32 %v817, %v963
          %v965 = vpop.f32.mrb[0].mxu0
          %966 = vmatprep.mubr.f32.mxu0 0.0
          %v967 = vand.u32 %v473, 4294901760
          %v968 = vsub.f32 %v473, %v967
          %969 = vmatmul.mubr.f32.gmra.mrb[0].mxu0 %v968
          %v970 = vpop.f32.mrb[0].mxu0
          %v971 = vadd.f32 %v823, %v970
          %v972 = vpop.f32.mrb[0].mxu0
          %973 = vmatprep.mubr.f32.mxu0 0.0
          %v974 = vand.u32 %v474, 4294901760
          %v975 = vsub.f32 %v474, %v974
          %976 = vmatmul.mubr.f32.gmra.mrb[0].mxu0 %v975
          %v977 = vpop.f32.mrb[0].mxu0
          %v978 = vadd.f32 %v829, %v977
          %v979 = vpop.f32.mrb[0].mxu0
          %980 = vmatprep.mubr.f32.mxu0 0.0
          %v981 = vand.u32 %v475, 4294901760
          %v982 = vsub.f32 %v475, %v981
          %983 = vmatmul.mubr.f32.gmra.mrb[0].mxu0 %v982
          %v984 = vpop.f32.mrb[0].mxu0
          %v985 = vadd.f32 %v835, %v984
          %v986 = vpop.f32.mrb[0].mxu0
          %987 = vmatprep.mubr.f32.mxu0 0.0
          %v988 = vand.u32 %v476, 4294901760
          %v989 = vsub.f32 %v476, %v988
          %990 = vmatmul.mubr.f32.gmra.mrb[0].mxu0 %v989
          %v991 = vpop.f32.mrb[0].mxu0
          %v992 = vadd.f32 %v841, %v991
          %v993 = vpop.f32.mrb[0].mxu0
          %994 = vmatprep.mubr.f32.mxu0 0.0
          %v995 = vand.u32 %v477, 4294901760
          %v996 = vsub.f32 %v477, %v995
          %997 = vmatmul.mubr.f32.gmra.mrb[0].mxu0 %v996
          %v998 = vpop.f32.mrb[0].mxu0
          %v999 = vadd.f32 %v847, %v998
          %v1000 = vpop.f32.mrb[0].mxu0
          %1001 = vmatprep.mubr.f32.mxu0 0.0
          %v1002 = vand.u32 %v478, 4294901760
          %v1003 = vsub.f32 %v478, %v1002
          %1004 = vmatmul.mubr.f32.gmra.mrb[0].mxu0 %v1003
          %v1005 = vpop.f32.mrb[0].mxu0
          %v1006 = vadd.f32 %v853, %v1005
          %v1007 = vpop.f32.mrb[0].mxu0
          %1008 = vdwg.mxu0
          %1009 = vmatprep.subr.mxu0 0.0
          %v1010 = vand.u32 %v479, 4294901760
          %1011 = vmatpush1.msra.mxu0 %v1010
          %1012 = vmatprep.subr.mxu0 0.0
          %v1013 = vand.u32 %v480, 4294901760
          %1014 = vmatpush1.msra.mxu0 %v1013
          %1015 = vmatprep.subr.mxu0 0.0
          %v1016 = vand.u32 %v481, 4294901760
          %1017 = vmatpush1.msra.mxu0 %v1016
          %1018 = vmatprep.subr.mxu0 0.0
          %v1019 = vand.u32 %v482, 4294901760
          %1020 = vmatpush1.msra.mxu0 %v1019
          %1021 = vmatprep.subr.mxu0 0.0
          %v1022 = vand.u32 %v483, 4294901760
          %1023 = vmatpush1.msra.mxu0 %v1022
          %1024 = vmatprep.subr.mxu0 0.0
          %v1025 = vand.u32 %v484, 4294901760
          %1026 = vmatpush1.msra.mxu0 %v1025
          %1027 = vmatprep.subr.mxu0 0.0
          %v1028 = vand.u32 %v485, 4294901760
          %1029 = vmatpush1.msra.mxu0 %v1028
          %1030 = vmatprep.subr.mxu0 0.0
          %v1031 = vand.u32 %v486, 4294901760
          %1032 = vmatpush1.msra.mxu0 %v1031
          %1033 = vmatprep.subr.mxu0 0.0
          %v1034 = vand.u32 %v487, 4294901760
          %1035 = vmatpush1.msra.mxu0 %v1034
          %1036 = vmatprep.subr.mxu0 0.0
          %v1037 = vand.u32 %v488, 4294901760
          %1038 = vmatpush1.msra.mxu0 %v1037
          %1039 = vmatprep.subr.mxu0 0.0
          %v1040 = vand.u32 %v489, 4294901760
          %1041 = vmatpush1.msra.mxu0 %v1040
          %1042 = vmatprep.subr.mxu0 0.0
          %v1043 = vand.u32 %v490, 4294901760
          %1044 = vmatpush1.msra.mxu0 %v1043
          %1045 = vmatprep.subr.mxu0 0.0
          %v1046 = vand.u32 %v491, 4294901760
          %1047 = vmatpush1.msra.mxu0 %v1046
          %1048 = vmatprep.subr.mxu0 0.0
          %v1049 = vand.u32 %v492, 4294901760
          %1050 = vmatpush1.msra.mxu0 %v1049
          %1051 = vmatprep.subr.mxu0 0.0
          %v1052 = vand.u32 %v493, 4294901760
          %1053 = vmatpush1.msra.mxu0 %v1052
          %1054 = vmatprep.subr.mxu0 0.0
          %v1055 = vand.u32 %v494, 4294901760
          %1056 = vmatpush1.msra.mxu0 %v1055
          %1057 = vmatprep.subr.mxu0 0.0
          %1058 = vmatpush1.msra.mxu0 0.0
          %1059 = vmatprep.subr.mxu0 0.0
          %1060 = vmatpush1.msra.mxu0 0.0
          %1061 = vmatprep.subr.mxu0 0.0
          %1062 = vmatpush1.msra.mxu0 0.0
          %1063 = vmatprep.subr.mxu0 0.0
          %1064 = vmatpush1.msra.mxu0 0.0
          %1065 = vmatprep.subr.mxu0 0.0
          %1066 = vmatpush1.msra.mxu0 0.0
          %1067 = vmatprep.subr.mxu0 0.0
          %1068 = vmatpush1.msra.mxu0 0.0
          %1069 = vmatprep.subr.mxu0 0.0
          %1070 = vmatpush1.msra.mxu0 0.0
          %1071 = vmatprep.subr.mxu0 0.0
          %1072 = vmatpush1.msra.mxu0 0.0
          %1073 = vmatprep.subr.mxu0 0.0
          %1074 = vmatpush1.msra.mxu0 0.0
          %1075 = vmatprep.subr.mxu0 0.0
          %1076 = vmatpush1.msra.mxu0 0.0
          %1077 = vmatprep.subr.mxu0 0.0
          %1078 = vmatpush1.msra.mxu0 0.0
          %1079 = vmatprep.subr.mxu0 0.0
          %1080 = vmatpush1.msra.mxu0 0.0
          %1081 = vmatprep.subr.mxu0 0.0
          %1082 = vmatpush1.msra.mxu0 0.0
          %1083 = vmatprep.subr.mxu0 0.0
          %1084 = vmatpush1.msra.mxu0 0.0
          %1085 = vmatprep.subr.mxu0 0.0
          %1086 = vmatpush1.msra.mxu0 0.0
          %1087 = vmatprep.subr.mxu0 0.0
          %1088 = vmatpush1.msra.mxu0 0.0
          %1089 = vmatprep.mubr.f32.mxu0 0.0
          %v1090 = vand.u32 %v471, 4294901760
          %v1091 = vsub.f32 %v471, %v1090
          %v1092 = vand.u32 %v1091, 4294901760
          %1093 = vmatmul.mubr.f32.gmra.mrb[0].mxu0 %v1092
          %v1094 = vpop.f32.mrb[0].mxu0
          %v1095 = vadd.f32 %v957, %v1094
          %v1096 = vpop.f32.mrb[0].mxu0
          %1097 = vmatprep.mubr.f32.mxu0 0.0
          %v1098 = vand.u32 %v472, 4294901760
          %v1099 = vsub.f32 %v472, %v1098
          %v1100 = vand.u32 %v1099, 4294901760
          %1101 = vmatmul.mubr.f32.gmra.mrb[0].mxu0 %v1100
          %v1102 = vpop.f32.mrb[0].mxu0
          %v1103 = vadd.f32 %v964, %v1102
          %v1104 = vpop.f32.mrb[0].mxu0
          %1105 = vmatprep.mubr.f32.mxu0 0.0
          %v1106 = vand.u32 %v473, 4294901760
          %v1107 = vsub.f32 %v473, %v1106
          %v1108 = vand.u32 %v1107, 4294901760
          %1109 = vmatmul.mubr.f32.gmra.mrb[0].mxu0 %v1108
          %v1110 = vpop.f32.mrb[0].mxu0
          %v1111 = vadd.f32 %v971, %v1110
          %v1112 = vpop.f32.mrb[0].mxu0
          %1113 = vmatprep.mubr.f32.mxu0 0.0
          %v1114 = vand.u32 %v474, 4294901760
          %v1115 = vsub.f32 %v474, %v1114
          %v1116 = vand.u32 %v1115, 4294901760
          %1117 = vmatmul.mubr.f32.gmra.mrb[0].mxu0 %v1116
          %v1118 = vpop.f32.mrb[0].mxu0
          %v1119 = vadd.f32 %v978, %v1118
          %v1120 = vpop.f32.mrb[0].mxu0
          %1121 = vmatprep.mubr.f32.mxu0 0.0
          %v1122 = vand.u32 %v475, 4294901760
          %v1123 = vsub.f32 %v475, %v1122
          %v1124 = vand.u32 %v1123, 4294901760
          %1125 = vmatmul.mubr.f32.gmra.mrb[0].mxu0 %v1124
          %v1126 = vpop.f32.mrb[0].mxu0
          %v1127 = vadd.f32 %v985, %v1126
          %v1128 = vpop.f32.mrb[0].mxu0
          %1129 = vmatprep.mubr.f32.mxu0 0.0
          %v1130 = vand.u32 %v476, 4294901760
          %v1131 = vsub.f32 %v476, %v1130
          %v1132 = vand.u32 %v1131, 4294901760
          %1133 = vmatmul.mubr.f32.gmra.mrb[0].mxu0 %v1132
          %v1134 = vpop.f32.mrb[0].mxu0
          %v1135 = vadd.f32 %v992, %v1134
          %v1136 = vpop.f32.mrb[0].mxu0
          %1137 = vmatprep.mubr.f32.mxu0 0.0
          %v1138 = vand.u32 %v477, 4294901760
          %v1139 = vsub.f32 %v477, %v1138
          %v1140 = vand.u32 %v1139, 4294901760
          %1141 = vmatmul.mubr.f32.gmra.mrb[0].mxu0 %v1140
          %v1142 = vpop.f32.mrb[0].mxu0
          %v1143 = vadd.f32 %v999, %v1142
          %v1144 = vpop.f32.mrb[0].mxu0
          %1145 = vmatprep.mubr.f32.mxu0 0.0
          %v1146 = vand.u32 %v478, 4294901760
          %v1147 = vsub.f32 %v478, %v1146
          %v1148 = vand.u32 %v1147, 4294901760
          %1149 = vmatmul.mubr.f32.gmra.mrb[0].mxu0 %v1148
          %v1150 = vpop.f32.mrb[0].mxu0
          %v1151 = vadd.f32 %v1006, %v1150
          %v1152 = vpop.f32.mrb[0].mxu0
          %1153 = vdwg.mxu0
          %1154 = vmatprep.subr.mxu0 0.0
          %v1155 = vand.u32 %v479, 4294901760
          %v1156 = vsub.f32 %v479, %v1155
          %v1157 = vand.u32 %v1156, 4294901760
          %1158 = vmatpush1.msra.mxu0 %v1157
          %1159 = vmatprep.subr.mxu0 0.0
          %v1160 = vand.u32 %v480, 4294901760
          %v1161 = vsub.f32 %v480, %v1160
          %v1162 = vand.u32 %v1161, 4294901760
          %1163 = vmatpush1.msra.mxu0 %v1162
          %1164 = vmatprep.subr.mxu0 0.0
          %v1165 = vand.u32 %v481, 4294901760
          %v1166 = vsub.f32 %v481, %v1165
          %v1167 = vand.u32 %v1166, 4294901760
          %1168 = vmatpush1.msra.mxu0 %v1167
          %1169 = vmatprep.subr.mxu0 0.0
          %v1170 = vand.u32 %v482, 4294901760
          %v1171 = vsub.f32 %v482, %v1170
          %v1172 = vand.u32 %v1171, 4294901760
          %1173 = vmatpush1.msra.mxu0 %v1172
          %1174 = vmatprep.subr.mxu0 0.0
          %v1175 = vand.u32 %v483, 4294901760
          %v1176 = vsub.f32 %v483, %v1175
          %v1177 = vand.u32 %v1176, 4294901760
          %1178 = vmatpush1.msra.mxu0 %v1177
          %1179 = vmatprep.subr.mxu0 0.0
          %v1180 = vand.u32 %v484, 4294901760
          %v1181 = vsub.f32 %v484, %v1180
          %v1182 = vand.u32 %v1181, 4294901760
          %1183 = vmatpush1.msra.mxu0 %v1182
          %1184 = vmatprep.subr.mxu0 0.0
          %v1185 = vand.u32 %v485, 4294901760
          %v1186 = vsub.f32 %v485, %v1185
          %v1187 = vand.u32 %v1186, 4294901760
          %1188 = vmatpush1.msra.mxu0 %v1187
          %1189 = vmatprep.subr.mxu0 0.0
          %v1190 = vand.u32 %v486, 4294901760
          %v1191 = vsub.f32 %v486, %v1190
          %v1192 = vand.u32 %v1191, 4294901760
          %1193 = vmatpush1.msra.mxu0 %v1192
          %1194 = vmatprep.subr.mxu0 0.0
          %v1195 = vand.u32 %v487, 4294901760
          %v1196 = vsub.f32 %v487, %v1195
          %v1197 = vand.u32 %v1196, 4294901760
          %1198 = vmatpush1.msra.mxu0 %v1197
          %1199 = vmatprep.subr.mxu0 0.0
          %v1200 = vand.u32 %v488, 4294901760
          %v1201 = vsub.f32 %v488, %v1200
          %v1202 = vand.u32 %v1201, 4294901760
          %1203 = vmatpush1.msra.mxu0 %v1202
          %1204 = vmatprep.subr.mxu0 0.0
          %v1205 = vand.u32 %v489, 4294901760
          %v1206 = vsub.f32 %v489, %v1205
          %v1207 = vand.u32 %v1206, 4294901760
          %1208 = vmatpush1.msra.mxu0 %v1207
          %1209 = vmatprep.subr.mxu0 0.0
          %v1210 = vand.u32 %v490, 4294901760
          %v1211 = vsub.f32 %v490, %v1210
          %v1212 = vand.u32 %v1211, 4294901760
          %1213 = vmatpush1.msra.mxu0 %v1212
          %1214 = vmatprep.subr.mxu0 0.0
          %v1215 = vand.u32 %v491, 4294901760
          %v1216 = vsub.f32 %v491, %v1215
          %v1217 = vand.u32 %v1216, 4294901760
          %1218 = vmatpush1.msra.mxu0 %v1217
          %1219 = vmatprep.subr.mxu0 0.0
          %v1220 = vand.u32 %v492, 4294901760
          %v1221 = vsub.f32 %v492, %v1220
          %v1222 = vand.u32 %v1221, 4294901760
          %1223 = vmatpush1.msra.mxu0 %v1222
          %1224 = vmatprep.subr.mxu0 0.0
          %v1225 = vand.u32 %v493, 4294901760
          %v1226 = vsub.f32 %v493, %v1225
          %v1227 = vand.u32 %v1226, 4294901760
          %1228 = vmatpush1.msra.mxu0 %v1227
          %1229 = vmatprep.subr.mxu0 0.0
          %v1230 = vand.u32 %v494, 4294901760
          %v1231 = vsub.f32 %v494, %v1230
          %v1232 = vand.u32 %v1231, 4294901760
          %1233 = vmatpush1.msra.mxu0 %v1232
          %1234 = vmatprep.subr.mxu0 0.0
          %1235 = vmatpush1.msra.mxu0 0.0
          %1236 = vmatprep.subr.mxu0 0.0
          %1237 = vmatpush1.msra.mxu0 0.0
          %1238 = vmatprep.subr.mxu0 0.0
          %1239 = vmatpush1.msra.mxu0 0.0
          %1240 = vmatprep.subr.mxu0 0.0
          %1241 = vmatpush1.msra.mxu0 0.0
          %1242 = vmatprep.subr.mxu0 0.0
          %1243 = vmatpush1.msra.mxu0 0.0
          %1244 = vmatprep.subr.mxu0 0.0
          %1245 = vmatpush1.msra.mxu0 0.0
          %1246 = vmatprep.subr.mxu0 0.0
          %1247 = vmatpush1.msra.mxu0 0.0
          %1248 = vmatprep.subr.mxu0 0.0
          %1249 = vmatpush1.msra.mxu0 0.0
          %1250 = vmatprep.subr.mxu0 0.0
          %1251 = vmatpush1.msra.mxu0 0.0
          %1252 = vmatprep.subr.mxu0 0.0
          %1253 = vmatpush1.msra.mxu0 0.0
          %1254 = vmatprep.subr.mxu0 0.0
          %1255 = vmatpush1.msra.mxu0 0.0
          %1256 = vmatprep.subr.mxu0 0.0
          %1257 = vmatpush1.msra.mxu0 0.0
          %1258 = vmatprep.subr.mxu0 0.0
          %1259 = vmatpush1.msra.mxu0 0.0
          %1260 = vmatprep.subr.mxu0 0.0
          %1261 = vmatpush1.msra.mxu0 0.0
          %1262 = vmatprep.subr.mxu0 0.0
          %1263 = vmatpush1.msra.mxu0 0.0
          %1264 = vmatprep.subr.mxu0 0.0
          %1265 = vmatpush1.msra.mxu0 0.0
          %1266 = vmatprep.mubr.f32.mxu0 0.0
          %v1267 = vand.u32 %v471, 4294901760
          %1268 = vmatmul.mubr.f32.gmra.mrb[0].mxu0 %v1267
          %v1269 = vpop.f32.mrb[0].mxu0
          %v1270 = vadd.f32 %v1095, %v1269
          %v1271 = vpop.f32.mrb[0].mxu0
          %1272 = vmatprep.mubr.f32.mxu0 0.0
          %v1273 = vand.u32 %v472, 4294901760
          %1274 = vmatmul.mubr.f32.gmra.mrb[0].mxu0 %v1273
          %v1275 = vpop.f32.mrb[0].mxu0
          %v1276 = vadd.f32 %v1103, %v1275
          %v1277 = vpop.f32.mrb[0].mxu0
          %1278 = vmatprep.mubr.f32.mxu0 0.0
          %v1279 = vand.u32 %v473, 4294901760
          %1280 = vmatmul.mubr.f32.gmra.mrb[0].mxu0 %v1279
          %v1281 = vpop.f32.mrb[0].mxu0
          %v1282 = vadd.f32 %v1111, %v1281
          %v1283 = vpop.f32.mrb[0].mxu0
          %1284 = vmatprep.mubr.f32.mxu0 0.0
          %v1285 = vand.u32 %v474, 4294901760
          %1286 = vmatmul.mubr.f32.gmra.mrb[0].mxu0 %v1285
          %v1287 = vpop.f32.mrb[0].mxu0
          %v1288 = vadd.f32 %v1119, %v1287
          %v1289 = vpop.f32.mrb[0].mxu0
          %1290 = vmatprep.mubr.f32.mxu0 0.0
          %v1291 = vand.u32 %v475, 4294901760
          %1292 = vmatmul.mubr.f32.gmra.mrb[0].mxu0 %v1291
          %v1293 = vpop.f32.mrb[0].mxu0
          %v1294 = vadd.f32 %v1127, %v1293
          %v1295 = vpop.f32.mrb[0].mxu0
          %1296 = vmatprep.mubr.f32.mxu0 0.0
          %v1297 = vand.u32 %v476, 4294901760
          %1298 = vmatmul.mubr.f32.gmra.mrb[0].mxu0 %v1297
          %v1299 = vpop.f32.mrb[0].mxu0
          %v1300 = vadd.f32 %v1135, %v1299
          %v1301 = vpop.f32.mrb[0].mxu0
          %1302 = vmatprep.mubr.f32.mxu0 0.0
          %v1303 = vand.u32 %v477, 4294901760
          %1304 = vmatmul.mubr.f32.gmra.mrb[0].mxu0 %v1303
          %v1305 = vpop.f32.mrb[0].mxu0
          %v1306 = vadd.f32 %v1143, %v1305
          %v1307 = vpop.f32.mrb[0].mxu0
          %1308 = vmatprep.mubr.f32.mxu0 0.0
          %v1309 = vand.u32 %v478, 4294901760
          %1310 = vmatmul.mubr.f32.gmra.mrb[0].mxu0 %v1309
          %v1311 = vpop.f32.mrb[0].mxu0
          %v1312 = vadd.f32 %v1151, %v1311
          %v1313 = vpop.f32.mrb[0].mxu0
          %1314 = vdwg.mxu0
          %1315 = vmatprep.subr.mxu0 0.0
          %v1316 = vand.u32 %v479, 4294901760
          %1317 = vmatpush1.msra.mxu0 %v1316
          %1318 = vmatprep.subr.mxu0 0.0
          %v1319 = vand.u32 %v480, 4294901760
          %1320 = vmatpush1.msra.mxu0 %v1319
          %1321 = vmatprep.subr.mxu0 0.0
          %v1322 = vand.u32 %v481, 4294901760
          %1323 = vmatpush1.msra.mxu0 %v1322
          %1324 = vmatprep.subr.mxu0 0.0
          %v1325 = vand.u32 %v482, 4294901760
          %1326 = vmatpush1.msra.mxu0 %v1325
          %1327 = vmatprep.subr.mxu0 0.0
          %v1328 = vand.u32 %v483, 4294901760
          %1329 = vmatpush1.msra.mxu0 %v1328
          %1330 = vmatprep.subr.mxu0 0.0
          %v1331 = vand.u32 %v484, 4294901760
          %1332 = vmatpush1.msra.mxu0 %v1331
          %1333 = vmatprep.subr.mxu0 0.0
          %v1334 = vand.u32 %v485, 4294901760
          %1335 = vmatpush1.msra.mxu0 %v1334
          %1336 = vmatprep.subr.mxu0 0.0
          %v1337 = vand.u32 %v486, 4294901760
          %1338 = vmatpush1.msra.mxu0 %v1337
          %1339 = vmatprep.subr.mxu0 0.0
          %v1340 = vand.u32 %v487, 4294901760
          %1341 = vmatpush1.msra.mxu0 %v1340
          %1342 = vmatprep.subr.mxu0 0.0
          %v1343 = vand.u32 %v488, 4294901760
          %1344 = vmatpush1.msra.mxu0 %v1343
          %1345 = vmatprep.subr.mxu0 0.0
          %v1346 = vand.u32 %v489, 4294901760
          %1347 = vmatpush1.msra.mxu0 %v1346
          %1348 = vmatprep.subr.mxu0 0.0
          %v1349 = vand.u32 %v490, 4294901760
          %1350 = vmatpush1.msra.mxu0 %v1349
          %1351 = vmatprep.subr.mxu0 0.0
          %v1352 = vand.u32 %v491, 4294901760
          %1353 = vmatpush1.msra.mxu0 %v1352
          %1354 = vmatprep.subr.mxu0 0.0
          %v1355 = vand.u32 %v492, 4294901760
          %1356 = vmatpush1.msra.mxu0 %v1355
          %1357 = vmatprep.subr.mxu0 0.0
          %v1358 = vand.u32 %v493, 4294901760
          %1359 = vmatpush1.msra.mxu0 %v1358
          %1360 = vmatprep.subr.mxu0 0.0
          %v1361 = vand.u32 %v494, 4294901760
          %1362 = vmatpush1.msra.mxu0 %v1361
          %1363 = vmatprep.subr.mxu0 0.0
          %1364 = vmatpush1.msra.mxu0 0.0
          %1365 = vmatprep.subr.mxu0 0.0
          %1366 = vmatpush1.msra.mxu0 0.0
          %1367 = vmatprep.subr.mxu0 0.0
          %1368 = vmatpush1.msra.mxu0 0.0
          %1369 = vmatprep.subr.mxu0 0.0
          %1370 = vmatpush1.msra.mxu0 0.0
          %1371 = vmatprep.subr.mxu0 0.0
          %1372 = vmatpush1.msra.mxu0 0.0
          %1373 = vmatprep.subr.mxu0 0.0
          %1374 = vmatpush1.msra.mxu0 0.0
          %1375 = vmatprep.subr.mxu0 0.0
          %1376 = vmatpush1.msra.mxu0 0.0
          %1377 = vmatprep.subr.mxu0 0.0
          %1378 = vmatpush1.msra.mxu0 0.0
          %1379 = vmatprep.subr.mxu0 0.0
          %1380 = vmatpush1.msra.mxu0 0.0
          %1381 = vmatprep.subr.mxu0 0.0
          %1382 = vmatpush1.msra.mxu0 0.0
          %1383 = vmatprep.subr.mxu0 0.0
          %1384 = vmatpush1.msra.mxu0 0.0
          %1385 = vmatprep.subr.mxu0 0.0
          %1386 = vmatpush1.msra.mxu0 0.0
          %1387 = vmatprep.subr.mxu0 0.0
          %1388 = vmatpush1.msra.mxu0 0.0
          %1389 = vmatprep.subr.mxu0 0.0
          %1390 = vmatpush1.msra.mxu0 0.0
          %1391 = vmatprep.subr.mxu0 0.0
          %1392 = vmatpush1.msra.mxu0 0.0
          %1393 = vmatprep.subr.mxu0 0.0
          %1394 = vmatpush1.msra.mxu0 0.0
          %1395 = vmatprep.mubr.f32.mxu0 0.0
          %v1396 = vand.u32 %v471, 4294901760
          %1397 = vmatmul.mubr.f32.gmra.mrb[0].mxu0 %v1396
          %v1398 = vpop.f32.mrb[0].mxu0
          %v1399 = vadd.f32 %v1270, %v1398
          %v1400 = vpop.f32.mrb[0].mxu0
          %1401 = vmatprep.mubr.f32.mxu0 0.0
          %v1402 = vand.u32 %v472, 4294901760
          %1403 = vmatmul.mubr.f32.gmra.mrb[0].mxu0 %v1402
          %v1404 = vpop.f32.mrb[0].mxu0
          %v1405 = vadd.f32 %v1276, %v1404
          %v1406 = vpop.f32.mrb[0].mxu0
          %1407 = vmatprep.mubr.f32.mxu0 0.0
          %v1408 = vand.u32 %v473, 4294901760
          %1409 = vmatmul.mubr.f32.gmra.mrb[0].mxu0 %v1408
          %v1410 = vpop.f32.mrb[0].mxu0
          %v1411 = vadd.f32 %v1282, %v1410
          %v1412 = vpop.f32.mrb[0].mxu0
          %1413 = vmatprep.mubr.f32.mxu0 0.0
          %v1414 = vand.u32 %v474, 4294901760
          %1415 = vmatmul.mubr.f32.gmra.mrb[0].mxu0 %v1414
          %v1416 = vpop.f32.mrb[0].mxu0
          %v1417 = vadd.f32 %v1288, %v1416
          %v1418 = vpop.f32.mrb[0].mxu0
          %1419 = vmatprep.mubr.f32.mxu0 0.0
          %v1420 = vand.u32 %v475, 4294901760
          %1421 = vmatmul.mubr.f32.gmra.mrb[0].mxu0 %v1420
          %v1422 = vpop.f32.mrb[0].mxu0
          %v1423 = vadd.f32 %v1294, %v1422
          %v1424 = vpop.f32.mrb[0].mxu0
          %1425 = vmatprep.mubr.f32.mxu0 0.0
          %v1426 = vand.u32 %v476, 4294901760
          %1427 = vmatmul.mubr.f32.gmra.mrb[0].mxu0 %v1426
          %v1428 = vpop.f32.mrb[0].mxu0
          %v1429 = vadd.f32 %v1300, %v1428
          %v1430 = vpop.f32.mrb[0].mxu0
          %1431 = vmatprep.mubr.f32.mxu0 0.0
          %v1432 = vand.u32 %v477, 4294901760
          %1433 = vmatmul.mubr.f32.gmra.mrb[0].mxu0 %v1432
          %v1434 = vpop.f32.mrb[0].mxu0
          %v1435 = vadd.f32 %v1306, %v1434
          %v1436 = vpop.f32.mrb[0].mxu0
          %1437 = vmatprep.mubr.f32.mxu0 0.0
          %v1438 = vand.u32 %v478, 4294901760
          %1439 = vmatmul.mubr.f32.gmra.mrb[0].mxu0 %v1438
          %v1440 = vpop.f32.mrb[0].mxu0
          %v1441 = vadd.f32 %v1312, %v1440
          %v1442 = vpop.f32.mrb[0].mxu0
          %1443 = vdwg.mxu0
          %1444 = vst [vmem:[#allocation2] sm:$0xff] %v1399
          %1445 = vst [vmem:[#allocation2 + $0x8] sm:$0xff] %v1405
          %1446 = vst [vmem:[#allocation2 + $0x10] sm:$0xff] %v1411
          %1447 = vst [vmem:[#allocation2 + $0x18] sm:$0xff] %v1417
          %1448 = vst [vmem:[#allocation2 + $0x20] sm:$0xff] %v1423
          %1449 = vst [vmem:[#allocation2 + $0x28] sm:$0xff] %v1429
          %1450 = vst [vmem:[#allocation2 + $0x30] sm:$0xff] %v1435
          %1451 = vst [vmem:[#allocation2 + $0x38] sm:$0xff] %v1441
        $region76: #{tpu_custom_call.1} parent=55 // pred_fallthru
          _
        %v1452 = vld [vmem:[#allocation2] sm:$0xff]
        %v1453 = vld [vmem:[#allocation2 + $0x8] sm:$0xff]
        %v1454 = vld [vmem:[#allocation2 + $0x10] sm:$0xff]
        %v1455 = vld [vmem:[#allocation2 + $0x18] sm:$0xff]
        %v1456 = vld [vmem:[#allocation2 + $0x20] sm:$0xff]
        %v1457 = vld [vmem:[#allocation2 + $0x28] sm:$0xff]
        %v1458 = vld [vmem:[#allocation2 + $0x30] sm:$0xff]
        %v1459 = vld [vmem:[#allocation2 + $0x38] sm:$0xff]
        %v1460 = vld [vmem:[%s405] sm:$0xff]
        %v1461 = vlaneseq
        %v1462 = vshrl.u32 %v1461, 7
        %v1463 = vsub.s32 0, %v1462
        %v1464 = vrot.slane %v1460, %v1463
        %v1465 = vmul.f32 %v1452, %v1464
        %v1466 = vmul.f32 %v1453, %v1464
        %v1467 = vmul.f32 %v1454, %v1464
        %v1468 = vmul.f32 %v1455, %v1464
        %v1469 = vmul.f32 %v1456, %v1464
        %v1470 = vmul.f32 %v1457, %v1464
        %v1471 = vmul.f32 %v1458, %v1464
        %v1472 = vmul.f32 %v1459, %v1464
        %v1473 = vlaneseq
        %v1474 = vshrl.u32 %v1473, 7
        %v1475 = vsub.s32 1, %v1474
        %v1476 = vrot.slane %v1460, %v1475
        %v1477 = vmul.f32 %v1476, 0.0
        %v1478 = vmul.f32 %v1452, %v1476
        %v1479 = vmul.f32 %v1453, %v1476
        %v1480 = vmul.f32 %v1454, %v1476
        %v1481 = vmul.f32 %v1455, %v1476
        %v1482 = vmul.f32 %v1456, %v1476
        %v1483 = vmul.f32 %v1457, %v1476
        %v1484 = vmul.f32 %v1458, %v1476
        %v1485 = vadd.f32 %v1465, %v1477
        %v1486 = vadd.f32 %v1466, %v1478
        %v1487 = vadd.f32 %v1467, %v1479
        %v1488 = vadd.f32 %v1468, %v1480
        %v1489 = vadd.f32 %v1469, %v1481
        %v1490 = vadd.f32 %v1470, %v1482
        %v1491 = vadd.f32 %v1471, %v1483
        %v1492 = vadd.f32 %v1472, %v1484
        %v1493 = vlaneseq
        %v1494 = vshrl.u32 %v1493, 7
        %v1495 = vsub.s32 2, %v1494
        %v1496 = vrot.slane %v1460, %v1495
        %v1497 = vmul.f32 %v1496, 0.0
        %v1498 = vmul.f32 %v1452, %v1496
        %v1499 = vmul.f32 %v1453, %v1496
        %v1500 = vmul.f32 %v1454, %v1496
        %v1501 = vmul.f32 %v1455, %v1496
        %v1502 = vmul.f32 %v1456, %v1496
        %v1503 = vmul.f32 %v1457, %v1496
        %v1504 = vadd.f32 %v1485, %v1497
        %v1505 = vadd.f32 %v1486, %v1497
        %v1506 = vadd.f32 %v1487, %v1498
        %v1507 = vadd.f32 %v1488, %v1499
        %v1508 = vadd.f32 %v1489, %v1500
        %v1509 = vadd.f32 %v1490, %v1501
        %v1510 = vadd.f32 %v1491, %v1502
        %v1511 = vadd.f32 %v1492, %v1503
        %v1512 = vlaneseq
        %v1513 = vshrl.u32 %v1512, 7
        %v1514 = vsub.s32 3, %v1513
        %v1515 = vrot.slane %v1460, %v1514
        %v1516 = vmul.f32 %v1515, 0.0
        %v1517 = vmul.f32 %v1452, %v1515
        %v1518 = vmul.f32 %v1453, %v1515
        %v1519 = vmul.f32 %v1454, %v1515
        %v1520 = vmul.f32 %v1455, %v1515
        %v1521 = vmul.f32 %v1456, %v1515
        %v1522 = vadd.f32 %v1504, %v1516
        %v1523 = vadd.f32 %v1505, %v1516
        %v1524 = vadd.f32 %v1506, %v1516
        %v1525 = vadd.f32 %v1507, %v1517
        %v1526 = vadd.f32 %v1508, %v1518
        %v1527 = vadd.f32 %v1509, %v1519
        %v1528 = vadd.f32 %v1510, %v1520
        %v1529 = vadd.f32 %v1511, %v1521
        %v1530 = vlaneseq
        %v1531 = vshrl.u32 %v1530, 7
        %v1532 = vsub.s32 4, %v1531
        %v1533 = vrot.slane %v1460, %v1532
        %v1534 = vmul.f32 %v1533, 0.0
        %v1535 = vmul.f32 %v1452, %v1533
        %v1536 = vmul.f32 %v1453, %v1533
        %v1537 = vmul.f32 %v1454, %v1533
        %v1538 = vmul.f32 %v1455, %v1533
        %v1539 = vadd.f32 %v1522, %v1534
        %v1540 = vadd.f32 %v1523, %v1534
        %v1541 = vadd.f32 %v1524, %v1534
        %v1542 = vadd.f32 %v1525, %v1534
        %v1543 = vadd.f32 %v1526, %v1535
        %v1544 = vadd.f32 %v1527, %v1536
        %v1545 = vadd.f32 %v1528, %v1537
        %v1546 = vadd.f32 %v1529, %v1538
        %v1547 = vlaneseq
        %v1548 = vshrl.u32 %v1547, 7
        %v1549 = vsub.s32 5, %v1548
        %v1550 = vrot.slane %v1460, %v1549
        %v1551 = vmul.f32 %v1550, 0.0
        %v1552 = vmul.f32 %v1452, %v1550
        %v1553 = vmul.f32 %v1453, %v1550
        %v1554 = vmul.f32 %v1454, %v1550
        %v1555 = vadd.f32 %v1539, %v1551
        %v1556 = vadd.f32 %v1540, %v1551
        %v1557 = vadd.f32 %v1541, %v1551
        %v1558 = vadd.f32 %v1542, %v1551
        %v1559 = vadd.f32 %v1543, %v1551
        %v1560 = vadd.f32 %v1544, %v1552
        %v1561 = vadd.f32 %v1545, %v1553
        %v1562 = vadd.f32 %v1546, %v1554
        %v1563 = vlaneseq
        %v1564 = vshrl.u32 %v1563, 7
        %v1565 = vsub.s32 6, %v1564
        %v1566 = vrot.slane %v1460, %v1565
        %v1567 = vmul.f32 %v1566, 0.0
        %v1568 = vmul.f32 %v1452, %v1566
        %v1569 = vmul.f32 %v1453, %v1566
        %v1570 = vadd.f32 %v1555, %v1567
        %v1571 = vadd.f32 %v1556, %v1567
        %v1572 = vadd.f32 %v1557, %v1567
        %v1573 = vadd.f32 %v1558, %v1567
        %v1574 = vadd.f32 %v1559, %v1567
        %v1575 = vadd.f32 %v1560, %v1567
        %v1576 = vadd.f32 %v1561, %v1568
        %v1577 = vadd.f32 %v1562, %v1569
        %v1578 = vlaneseq
        %v1579 = vshrl.u32 %v1578, 7
        %v1580 = vsub.s32 7, %v1579
        %v1581 = vrot.slane %v1460, %v1580
        %v1582 = vmul.f32 %v1581, 0.0
        %v1583 = vmul.f32 %v1452, %v1581
        %v1584 = vadd.f32 %v1570, %v1582
        %v1585 = vadd.f32 %v1571, %v1582
        %v1586 = vadd.f32 %v1572, %v1582
        %v1587 = vadd.f32 %v1573, %v1582
        %v1588 = vadd.f32 %v1574, %v1582
        %v1589 = vadd.f32 %v1575, %v1582
        %v1590 = vadd.f32 %v1576, %v1582
        %v1591 = vadd.f32 %v1577, %v1583
        %v1592 = vld [vmem:[%s460] sm:$0x1]
        %v1594 = vlaneseq
        %v1595 = vshrl.u32 %v1594, 7
        %v1596 = vsub.s32 0, %v1595
        %v1597 = vrot.slane %v1592, %v1596
        %v1599 = vmul.f32 %v1452, %v1597
        %v1600 = vmul.f32 %v1453, %v1597
        %v1601 = vmul.f32 %v1454, %v1597
        %v1602 = vmul.f32 %v1455, %v1597
        %v1603 = vmul.f32 %v1456, %v1597
        %v1604 = vmul.f32 %v1457, %v1597
        %v1605 = vmul.f32 %v1458, %v1597
        %v1606 = vmul.f32 %v1459, %v1597
        %v1607 = vadd.f32 %v1584, %v1599
        %v1608 = vadd.f32 %v1585, %v1600
        %v1609 = vadd.f32 %v1586, %v1601
        %v1610 = vadd.f32 %v1587, %v1602
        %v1611 = vadd.f32 %v1588, %v1603
        %v1612 = vadd.f32 %v1589, %v1604
        %v1613 = vadd.f32 %v1590, %v1605
        %v1614 = vadd.f32 %v1591, %v1606
        %v1615 = vmul.f32 %v1607, %v1607
        %v1616 = vmul.f32 %v1608, %v1608
        %v1617 = vmul.f32 %v1609, %v1609
        %v1618 = vmul.f32 %v1610, %v1610
        %v1619 = vmul.f32 %v1611, %v1611
        %v1620 = vmul.f32 %v1612, %v1612
        %v1621 = vmul.f32 %v1613, %v1613
        %v1622 = vmul.f32 %v1614, %v1614
        %v1623 = vmul.f32 %v1607, %v1615
        %v1624 = vmul.f32 %v1608, %v1616
        %v1625 = vmul.f32 %v1609, %v1617
        %v1626 = vmul.f32 %v1610, %v1618
        %v1627 = vmul.f32 %v1611, %v1619
        %v1628 = vmul.f32 %v1612, %v1620
        %v1629 = vmul.f32 %v1613, %v1621
        %v1630 = vmul.f32 %v1614, %v1622
        %v1631 = vmul.f32 %v1623, 0.044715
        %v1632 = vmul.f32 %v1624, 0.044715
        %v1633 = vmul.f32 %v1625, 0.044715
        %v1634 = vmul.f32 %v1626, 0.044715
        %v1635 = vmul.f32 %v1627, 0.044715
        %v1636 = vmul.f32 %v1628, 0.044715
        %v1637 = vmul.f32 %v1629, 0.044715
        %v1638 = vmul.f32 %v1630, 0.044715
        %v1639 = vadd.f32 %v1607, %v1631
        %v1640 = vadd.f32 %v1608, %v1632
        %v1641 = vadd.f32 %v1609, %v1633
        %v1642 = vadd.f32 %v1610, %v1634
        %v1643 = vadd.f32 %v1611, %v1635
        %v1644 = vadd.f32 %v1612, %v1636
        %v1645 = vadd.f32 %v1613, %v1637
        %v1646 = vadd.f32 %v1614, %v1638
        %v1647 = vmul.f32 %v1639, 0.7978846
        %v1648 = vmul.f32 %v1640, 0.7978846
        %v1649 = vmul.f32 %v1641, 0.7978846
        %v1650 = vmul.f32 %v1642, 0.7978846
        %v1651 = vmul.f32 %v1643, 0.7978846
        %v1652 = vmul.f32 %v1644, 0.7978846
        %v1653 = vmul.f32 %v1645, 0.7978846
        %v1654 = vmul.f32 %v1646, 0.7978846
        %v1655 = vtanh.pop %v1647
        %v1656 = vtanh.pop %v1648
        %v1657 = vtanh.pop %v1649
        %v1658 = vtanh.pop %v1650
        %v1659 = vtanh.pop %v1651
        %v1660 = vtanh.pop %v1652
        %v1661 = vtanh.pop %v1653
        %v1662 = vtanh.pop %v1654
        %v1663 = vadd.f32 %v1655, 1.0
        %v1664 = vadd.f32 %v1656, 1.0
        %v1665 = vadd.f32 %v1657, 1.0
        %v1666 = vadd.f32 %v1658, 1.0
        %v1667 = vadd.f32 %v1659, 1.0
        %v1668 = vadd.f32 %v1660, 1.0
        %v1669 = vadd.f32 %v1661, 1.0
        %v1670 = vadd.f32 %v1662, 1.0
        %v1671 = vmul.f32 %v1663, 0.5
        %v1672 = vmul.f32 %v1664, 0.5
        %v1673 = vmul.f32 %v1665, 0.5
        %v1674 = vmul.f32 %v1666, 0.5
        %v1675 = vmul.f32 %v1667, 0.5
        %v1676 = vmul.f32 %v1668, 0.5
        %v1677 = vmul.f32 %v1669, 0.5
        %v1678 = vmul.f32 %v1670, 0.5
        %v1679 = vmul.f32 %v1607, %v1671
        %v1680 = vmul.f32 %v1608, %v1672
        %v1681 = vmul.f32 %v1609, %v1673
        %v1682 = vmul.f32 %v1610, %v1674
        %v1683 = vmul.f32 %v1611, %v1675
        %v1684 = vmul.f32 %v1612, %v1676
        %v1685 = vmul.f32 %v1613, %v1677
        %v1686 = vmul.f32 %v1614, %v1678
        %v1687 = vadd.f32 %v1679, %v1452
        %v1688 = vadd.f32 %v1680, %v1453
        %v1689 = vadd.f32 %v1681, %v1454
        %v1690 = vadd.f32 %v1682, %v1455
        %v1691 = vadd.f32 %v1683, %v1456
        %v1692 = vadd.f32 %v1684, %v1457
        %v1693 = vadd.f32 %v1685, %v1458
        %v1694 = vadd.f32 %v1686, %v1459
        %v1695 = vld [vmem:[%s463] sm:$0x1]
        %v1697 = vlaneseq
        %v1698 = vshrl.u32 %v1697, 7
        %v1699 = vsub.s32 0, %v1698
        %v1700 = vrot.slane %v1695, %v1699
        %v1702 = vmul.f32 %v1687, %v1700
        %v1703 = vmul.f32 %v1688, %v1700
        %v1704 = vmul.f32 %v1689, %v1700
        %v1705 = vmul.f32 %v1690, %v1700
        %v1706 = vmul.f32 %v1691, %v1700
        %v1707 = vmul.f32 %v1692, %v1700
        %v1708 = vmul.f32 %v1693, %v1700
        %v1709 = vmul.f32 %v1694, %v1700
        %v1710 = vld [vmem:[%s466] sm:$0x1]
        %v1712 = vlaneseq
        %v1713 = vshrl.u32 %v1712, 7
        %v1714 = vsub.s32 0, %v1713
        %v1715 = vrot.slane %v1710, %v1714
        %v1717 = vadd.f32 %v1702, %v1715
        %v1718 = vadd.f32 %v1703, %v1715
        %v1719 = vadd.f32 %v1704, %v1715
        %v1720 = vadd.f32 %v1705, %v1715
        %v1721 = vadd.f32 %v1706, %v1715
        %v1722 = vadd.f32 %v1707, %v1715
        %v1723 = vadd.f32 %v1708, %v1715
        %v1724 = vadd.f32 %v1709, %v1715
        %1725 = vst [vmem:[#allocation2] sm:$0xff] %v1717
        %1726 = vst [vmem:[#allocation2 + $0x8] sm:$0xff] %v1718
        %1727 = vst [vmem:[#allocation2 + $0x10] sm:$0xff] %v1719
        %1728 = vst [vmem:[#allocation2 + $0x18] sm:$0xff] %v1720
        %1729 = vst [vmem:[#allocation2 + $0x20] sm:$0xff] %v1721
        %1730 = vst [vmem:[#allocation2 + $0x28] sm:$0xff] %v1722
        %1731 = vst [vmem:[#allocation2 + $0x30] sm:$0xff] %v1723
        %1732 = vst [vmem:[#allocation2 + $0x38] sm:$0xff] %v1724
        %p1733 = scmp.eq.s32.totalorder %s32, 3
        // Predicated region
        $region77: #{tpu_custom_call.1} parent=55 // pred_check
          %p1734 = pneg %p1733
        $region78: #{tpu_custom_call.1} parent=55 // pred_check_branch
          %1736 = sbr.rel (%p1734) target = $region80
        $region79: #{tpu_custom_call.1} parent=55 // pred_region
          %v1737 = vld [vmem:[#allocation2] sm:$0xff]
          %v1738 = vld [vmem:[#allocation2 + $0x8] sm:$0xff]
          %v1739 = vld [vmem:[#allocation2 + $0x10] sm:$0xff]
          %v1740 = vld [vmem:[#allocation2 + $0x18] sm:$0xff]
          %v1741 = vld [vmem:[#allocation2 + $0x20] sm:$0xff]
          %v1742 = vld [vmem:[#allocation2 + $0x28] sm:$0xff]
          %v1743 = vld [vmem:[#allocation2 + $0x30] sm:$0xff]
          %v1744 = vld [vmem:[#allocation2 + $0x38] sm:$0xff]
          %v1745 = vadd.f32 %v1737, %v1738
          %v1746 = vadd.f32 %v1745, %v1739
          %v1747 = vadd.f32 %v1746, %v1740
          %v1748 = vadd.f32 %v1747, %v1741
          %v1749 = vadd.f32 %v1748, %v1742
          %v1750 = vadd.f32 %v1749, %v1743
          %v1751 = vadd.f32 %v1750, %v1744
          %v1752 = vrcp.pop 8.0
          %v1753 = vmul.f32 %v1751, %v1752
          %v1754 = vld [vmem:[#allocation9] sm:$0xff]
          %v1755 = vld [vmem:[#allocation9 + $0x8] sm:$0xff]
          %v1756 = vld [vmem:[#allocation9 + $0x10] sm:$0xff]
          %v1757 = vld [vmem:[#allocation9 + $0x18] sm:$0xff]
          %v1758 = vld [vmem:[#allocation9 + $0x20] sm:$0xff]
          %v1759 = vld [vmem:[#allocation9 + $0x28] sm:$0xff]
          %v1760 = vld [vmem:[#allocation9 + $0x30] sm:$0xff]
          %v1761 = vld [vmem:[#allocation9 + $0x38] sm:$0xff]
          %v1762 = vld [vmem:[#allocation9 + $0x40] sm:$0xff]
          %v1763 = vld [vmem:[#allocation9 + $0x48] sm:$0xff]
          %v1764 = vld [vmem:[#allocation9 + $0x50] sm:$0xff]
          %v1765 = vld [vmem:[#allocation9 + $0x58] sm:$0xff]
          %v1766 = vld [vmem:[#allocation9 + $0x60] sm:$0xff]
          %v1767 = vld [vmem:[#allocation9 + $0x68] sm:$0xff]
          %v1768 = vld [vmem:[#allocation9 + $0x70] sm:$0xff]
          %v1769 = vld [vmem:[#allocation9 + $0x78] sm:$0xff]
          %v1770 = vld [vmem:[%s8] sm:$0x1]
          %v1772 = vlaneseq
          %v1773 = vshrl.u32 %v1772, 7
          %v1774 = vsub.s32 0, %v1773
          %v1775 = vrot.slane %v1770, %v1774
          %1777 = vmatprep.subr.mxu0 0.0
          %v1778 = vand.u32 %v1754, 4294901760
          %1779 = vmatpush1.msra.mxu0 %v1778
          %1780 = vmatprep.subr.mxu0 0.0
          %v1781 = vand.u32 %v1755, 4294901760
          %1782 = vmatpush1.msra.mxu0 %v1781
          %1783 = vmatprep.subr.mxu0 0.0
          %v1784 = vand.u32 %v1756, 4294901760
          %1785 = vmatpush1.msra.mxu0 %v1784
          %1786 = vmatprep.subr.mxu0 0.0
          %v1787 = vand.u32 %v1757, 4294901760
          %1788 = vmatpush1.msra.mxu0 %v1787
          %1789 = vmatprep.subr.mxu0 0.0
          %v1790 = vand.u32 %v1758, 4294901760
          %1791 = vmatpush1.msra.mxu0 %v1790
          %1792 = vmatprep.subr.mxu0 0.0
          %v1793 = vand.u32 %v1759, 4294901760
          %1794 = vmatpush1.msra.mxu0 %v1793
          %1795 = vmatprep.subr.mxu0 0.0
          %v1796 = vand.u32 %v1760, 4294901760
          %1797 = vmatpush1.msra.mxu0 %v1796
          %1798 = vmatprep.subr.mxu0 0.0
          %v1799 = vand.u32 %v1761, 4294901760
          %1800 = vmatpush1.msra.mxu0 %v1799
          %1801 = vmatprep.subr.mxu0 0.0
          %v1802 = vand.u32 %v1762, 4294901760
          %1803 = vmatpush1.msra.mxu0 %v1802
          %1804 = vmatprep.subr.mxu0 0.0
          %v1805 = vand.u32 %v1763, 4294901760
          %1806 = vmatpush1.msra.mxu0 %v1805
          %1807 = vmatprep.subr.mxu0 0.0
          %v1808 = vand.u32 %v1764, 4294901760
          %1809 = vmatpush1.msra.mxu0 %v1808
          %1810 = vmatprep.subr.mxu0 0.0
          %v1811 = vand.u32 %v1765, 4294901760
          %1812 = vmatpush1.msra.mxu0 %v1811
          %1813 = vmatprep.subr.mxu0 0.0
          %v1814 = vand.u32 %v1766, 4294901760
          %1815 = vmatpush1.msra.mxu0 %v1814
          %1816 = vmatprep.subr.mxu0 0.0
          %v1817 = vand.u32 %v1767, 4294901760
          %1818 = vmatpush1.msra.mxu0 %v1817
          %1819 = vmatprep.subr.mxu0 0.0
          %v1820 = vand.u32 %v1768, 4294901760
          %1821 = vmatpush1.msra.mxu0 %v1820
          %1822 = vmatprep.subr.mxu0 0.0
          %v1823 = vand.u32 %v1769, 4294901760
          %1824 = vmatpush1.msra.mxu0 %v1823
          %1825 = vmatprep.subr.mxu0 0.0
          %1826 = vmatpush1.msra.mxu0 0.0
          %1827 = vmatprep.subr.mxu0 0.0
          %1828 = vmatpush1.msra.mxu0 0.0
          %1829 = vmatprep.subr.mxu0 0.0
          %1830 = vmatpush1.msra.mxu0 0.0
          %1831 = vmatprep.subr.mxu0 0.0
          %1832 = vmatpush1.msra.mxu0 0.0
          %1833 = vmatprep.subr.mxu0 0.0
          %1834 = vmatpush1.msra.mxu0 0.0
          %1835 = vmatprep.subr.mxu0 0.0
          %1836 = vmatpush1.msra.mxu0 0.0
          %1837 = vmatprep.subr.mxu0 0.0
          %1838 = vmatpush1.msra.mxu0 0.0
          %1839 = vmatprep.subr.mxu0 0.0
          %1840 = vmatpush1.msra.mxu0 0.0
          %1841 = vmatprep.subr.mxu0 0.0
          %1842 = vmatpush1.msra.mxu0 0.0
          %1843 = vmatprep.subr.mxu0 0.0
          %1844 = vmatpush1.msra.mxu0 0.0
          %1845 = vmatprep.subr.mxu0 0.0
          %1846 = vmatpush1.msra.mxu0 0.0
          %1847 = vmatprep.subr.mxu0 0.0
          %1848 = vmatpush1.msra.mxu0 0.0
          %1849 = vmatprep.subr.mxu0 0.0
          %1850 = vmatpush1.msra.mxu0 0.0
          %1851 = vmatprep.subr.mxu0 0.0
          %1852 = vmatpush1.msra.mxu0 0.0
          %1853 = vmatprep.subr.mxu0 0.0
          %1854 = vmatpush1.msra.mxu0 0.0
          %1855 = vmatprep.subr.mxu0 0.0
          %1856 = vmatpush1.msra.mxu0 0.0
          %1857 = vmatprep.mubr.f32.mxu0 0.0
          %v1858 = vand.u32 %v1753, 4294901760
          %v1859 = vsub.f32 %v1753, %v1858
          %v1860 = vand.u32 %v1859, 4294901760
          %v1861 = vsub.f32 %v1859, %v1860
          %v1862 = vand.u32 %v1861, 4294901760
          %1863 = vmatmul.mubr.f32.gmra.mrb[0].mxu0 %v1862
          %v1864 = vpop.f32.mrb[0].mxu0
          %v1865 = vadd.f32 %v1775, %v1864
          %v1866 = vpop.f32.mrb[0].mxu0
          %1867 = vdwg.mxu0
          %1868 = vmatprep.subr.mxu0 0.0
          %v1869 = vand.u32 %v1754, 4294901760
          %v1870 = vsub.f32 %v1754, %v1869
          %v1871 = vand.u32 %v1870, 4294901760
          %v1872 = vsub.f32 %v1870, %v1871
          %v1873 = vand.u32 %v1872, 4294901760
          %1874 = vmatpush1.msra.mxu0 %v1873
          %1875 = vmatprep.subr.mxu0 0.0
          %v1876 = vand.u32 %v1755, 4294901760
          %v1877 = vsub.f32 %v1755, %v1876
          %v1878 = vand.u32 %v1877, 4294901760
          %v1879 = vsub.f32 %v1877, %v1878
          %v1880 = vand.u32 %v1879, 4294901760
          %1881 = vmatpush1.msra.mxu0 %v1880
          %1882 = vmatprep.subr.mxu0 0.0
          %v1883 = vand.u32 %v1756, 4294901760
          %v1884 = vsub.f32 %v1756, %v1883
          %v1885 = vand.u32 %v1884, 4294901760
          %v1886 = vsub.f32 %v1884, %v1885
          %v1887 = vand.u32 %v1886, 4294901760
          %1888 = vmatpush1.msra.mxu0 %v1887
          %1889 = vmatprep.subr.mxu0 0.0
          %v1890 = vand.u32 %v1757, 4294901760
          %v1891 = vsub.f32 %v1757, %v1890
          %v1892 = vand.u32 %v1891, 4294901760
          %v1893 = vsub.f32 %v1891, %v1892
          %v1894 = vand.u32 %v1893, 4294901760
          %1895 = vmatpush1.msra.mxu0 %v1894
          %1896 = vmatprep.subr.mxu0 0.0
          %v1897 = vand.u32 %v1758, 4294901760
          %v1898 = vsub.f32 %v1758, %v1897
          %v1899 = vand.u32 %v1898, 4294901760
          %v1900 = vsub.f32 %v1898, %v1899
          %v1901 = vand.u32 %v1900, 4294901760
          %1902 = vmatpush1.msra.mxu0 %v1901
          %1903 = vmatprep.subr.mxu0 0.0
          %v1904 = vand.u32 %v1759, 4294901760
          %v1905 = vsub.f32 %v1759, %v1904
          %v1906 = vand.u32 %v1905, 4294901760
          %v1907 = vsub.f32 %v1905, %v1906
          %v1908 = vand.u32 %v1907, 4294901760
          %1909 = vmatpush1.msra.mxu0 %v1908
          %1910 = vmatprep.subr.mxu0 0.0
          %v1911 = vand.u32 %v1760, 4294901760
          %v1912 = vsub.f32 %v1760, %v1911
          %v1913 = vand.u32 %v1912, 4294901760
          %v1914 = vsub.f32 %v1912, %v1913
          %v1915 = vand.u32 %v1914, 4294901760
          %1916 = vmatpush1.msra.mxu0 %v1915
          %1917 = vmatprep.subr.mxu0 0.0
          %v1918 = vand.u32 %v1761, 4294901760
          %v1919 = vsub.f32 %v1761, %v1918
          %v1920 = vand.u32 %v1919, 4294901760
          %v1921 = vsub.f32 %v1919, %v1920
          %v1922 = vand.u32 %v1921, 4294901760
          %1923 = vmatpush1.msra.mxu0 %v1922
          %1924 = vmatprep.subr.mxu0 0.0
          %v1925 = vand.u32 %v1762, 4294901760
          %v1926 = vsub.f32 %v1762, %v1925
          %v1927 = vand.u32 %v1926, 4294901760
          %v1928 = vsub.f32 %v1926, %v1927
          %v1929 = vand.u32 %v1928, 4294901760
          %1930 = vmatpush1.msra.mxu0 %v1929
          %1931 = vmatprep.subr.mxu0 0.0
          %v1932 = vand.u32 %v1763, 4294901760
          %v1933 = vsub.f32 %v1763, %v1932
          %v1934 = vand.u32 %v1933, 4294901760
          %v1935 = vsub.f32 %v1933, %v1934
          %v1936 = vand.u32 %v1935, 4294901760
          %1937 = vmatpush1.msra.mxu0 %v1936
          %1938 = vmatprep.subr.mxu0 0.0
          %v1939 = vand.u32 %v1764, 4294901760
          %v1940 = vsub.f32 %v1764, %v1939
          %v1941 = vand.u32 %v1940, 4294901760
          %v1942 = vsub.f32 %v1940, %v1941
          %v1943 = vand.u32 %v1942, 4294901760
          %1944 = vmatpush1.msra.mxu0 %v1943
          %1945 = vmatprep.subr.mxu0 0.0
          %v1946 = vand.u32 %v1765, 4294901760
          %v1947 = vsub.f32 %v1765, %v1946
          %v1948 = vand.u32 %v1947, 4294901760
          %v1949 = vsub.f32 %v1947, %v1948
          %v1950 = vand.u32 %v1949, 4294901760
          %1951 = vmatpush1.msra.mxu0 %v1950
          %1952 = vmatprep.subr.mxu0 0.0
          %v1953 = vand.u32 %v1766, 4294901760
          %v1954 = vsub.f32 %v1766, %v1953
          %v1955 = vand.u32 %v1954, 4294901760
          %v1956 = vsub.f32 %v1954, %v1955
          %v1957 = vand.u32 %v1956, 4294901760
          %1958 = vmatpush1.msra.mxu0 %v1957
          %1959 = vmatprep.subr.mxu0 0.0
          %v1960 = vand.u32 %v1767, 4294901760
          %v1961 = vsub.f32 %v1767, %v1960
          %v1962 = vand.u32 %v1961, 4294901760
          %v1963 = vsub.f32 %v1961, %v1962
          %v1964 = vand.u32 %v1963, 4294901760
          %1965 = vmatpush1.msra.mxu0 %v1964
          %1966 = vmatprep.subr.mxu0 0.0
          %v1967 = vand.u32 %v1768, 4294901760
          %v1968 = vsub.f32 %v1768, %v1967
          %v1969 = vand.u32 %v1968, 4294901760
          %v1970 = vsub.f32 %v1968, %v1969
          %v1971 = vand.u32 %v1970, 4294901760
          %1972 = vmatpush1.msra.mxu0 %v1971
          %1973 = vmatprep.subr.mxu0 0.0
          %v1974 = vand.u32 %v1769, 4294901760
          %v1975 = vsub.f32 %v1769, %v1974
          %v1976 = vand.u32 %v1975, 4294901760
          %v1977 = vsub.f32 %v1975, %v1976
          %v1978 = vand.u32 %v1977, 4294901760
          %1979 = vmatpush1.msra.mxu0 %v1978
          %1980 = vmatprep.subr.mxu0 0.0
          %1981 = vmatpush1.msra.mxu0 0.0
          %1982 = vmatprep.subr.mxu0 0.0
          %1983 = vmatpush1.msra.mxu0 0.0
          %1984 = vmatprep.subr.mxu0 0.0
          %1985 = vmatpush1.msra.mxu0 0.0
          %1986 = vmatprep.subr.mxu0 0.0
          %1987 = vmatpush1.msra.mxu0 0.0
          %1988 = vmatprep.subr.mxu0 0.0
          %1989 = vmatpush1.msra.mxu0 0.0
          %1990 = vmatprep.subr.mxu0 0.0
          %1991 = vmatpush1.msra.mxu0 0.0
          %1992 = vmatprep.subr.mxu0 0.0
          %1993 = vmatpush1.msra.mxu0 0.0
          %1994 = vmatprep.subr.mxu0 0.0
          %1995 = vmatpush1.msra.mxu0 0.0
          %1996 = vmatprep.subr.mxu0 0.0
          %1997 = vmatpush1.msra.mxu0 0.0
          %1998 = vmatprep.subr.mxu0 0.0
          %1999 = vmatpush1.msra.mxu0 0.0
          %2000 = vmatprep.subr.mxu0 0.0
          %2001 = vmatpush1.msra.mxu0 0.0
          %2002 = vmatprep.subr.mxu0 0.0
          %2003 = vmatpush1.msra.mxu0 0.0
          %2004 = vmatprep.subr.mxu0 0.0
          %2005 = vmatpush1.msra.mxu0 0.0
          %2006 = vmatprep.subr.mxu0 0.0
          %2007 = vmatpush1.msra.mxu0 0.0
          %2008 = vmatprep.subr.mxu0 0.0
          %2009 = vmatpush1.msra.mxu0 0.0
          %2010 = vmatprep.subr.mxu0 0.0
          %2011 = vmatpush1.msra.mxu0 0.0
          %2012 = vmatprep.mubr.f32.mxu0 0.0
          %v2013 = vand.u32 %v1753, 4294901760
          %2014 = vmatmul.mubr.f32.gmra.mrb[0].mxu0 %v2013
          %v2015 = vpop.f32.mrb[0].mxu0
          %v2016 = vadd.f32 %v1865, %v2015
          %v2017 = vpop.f32.mrb[0].mxu0
          %2018 = vdwg.mxu0
          %2019 = vmatprep.subr.mxu0 0.0
          %v2020 = vand.u32 %v1754, 4294901760
          %v2021 = vsub.f32 %v1754, %v2020
          %2022 = vmatpush1.msra.mxu0 %v2021
          %2023 = vmatprep.subr.mxu0 0.0
          %v2024 = vand.u32 %v1755, 4294901760
          %v2025 = vsub.f32 %v1755, %v2024
          %2026 = vmatpush1.msra.mxu0 %v2025
          %2027 = vmatprep.subr.mxu0 0.0
          %v2028 = vand.u32 %v1756, 4294901760
          %v2029 = vsub.f32 %v1756, %v2028
          %2030 = vmatpush1.msra.mxu0 %v2029
          %2031 = vmatprep.subr.mxu0 0.0
          %v2032 = vand.u32 %v1757, 4294901760
          %v2033 = vsub.f32 %v1757, %v2032
          %2034 = vmatpush1.msra.mxu0 %v2033
          %2035 = vmatprep.subr.mxu0 0.0
          %v2036 = vand.u32 %v1758, 4294901760
          %v2037 = vsub.f32 %v1758, %v2036
          %2038 = vmatpush1.msra.mxu0 %v2037
          %2039 = vmatprep.subr.mxu0 0.0
          %v2040 = vand.u32 %v1759, 4294901760
          %v2041 = vsub.f32 %v1759, %v2040
          %2042 = vmatpush1.msra.mxu0 %v2041
          %2043 = vmatprep.subr.mxu0 0.0
          %v2044 = vand.u32 %v1760, 4294901760
          %v2045 = vsub.f32 %v1760, %v2044
          %2046 = vmatpush1.msra.mxu0 %v2045
          %2047 = vmatprep.subr.mxu0 0.0
          %v2048 = vand.u32 %v1761, 4294901760
          %v2049 = vsub.f32 %v1761, %v2048
          %2050 = vmatpush1.msra.mxu0 %v2049
          %2051 = vmatprep.subr.mxu0 0.0
          %v2052 = vand.u32 %v1762, 4294901760
          %v2053 = vsub.f32 %v1762, %v2052
          %2054 = vmatpush1.msra.mxu0 %v2053
          %2055 = vmatprep.subr.mxu0 0.0
          %v2056 = vand.u32 %v1763, 4294901760
          %v2057 = vsub.f32 %v1763, %v2056
          %2058 = vmatpush1.msra.mxu0 %v2057
          %2059 = vmatprep.subr.mxu0 0.0
          %v2060 = vand.u32 %v1764, 4294901760
          %v2061 = vsub.f32 %v1764, %v2060
          %2062 = vmatpush1.msra.mxu0 %v2061
          %2063 = vmatprep.subr.mxu0 0.0
          %v2064 = vand.u32 %v1765, 4294901760
          %v2065 = vsub.f32 %v1765, %v2064
          %2066 = vmatpush1.msra.mxu0 %v2065
          %2067 = vmatprep.subr.mxu0 0.0
          %v2068 = vand.u32 %v1766, 4294901760
          %v2069 = vsub.f32 %v1766, %v2068
          %2070 = vmatpush1.msra.mxu0 %v2069
          %2071 = vmatprep.subr.mxu0 0.0
          %v2072 = vand.u32 %v1767, 4294901760
          %v2073 = vsub.f32 %v1767, %v2072
          %2074 = vmatpush1.msra.mxu0 %v2073
          %2075 = vmatprep.subr.mxu0 0.0
          %v2076 = vand.u32 %v1768, 4294901760
          %v2077 = vsub.f32 %v1768, %v2076
          %2078 = vmatpush1.msra.mxu0 %v2077
          %2079 = vmatprep.subr.mxu0 0.0
          %v2080 = vand.u32 %v1769, 4294901760
          %v2081 = vsub.f32 %v1769, %v2080
          %2082 = vmatpush1.msra.mxu0 %v2081
          %2083 = vmatprep.subr.mxu0 0.0
          %2084 = vmatpush1.msra.mxu0 0.0
          %2085 = vmatprep.subr.mxu0 0.0
          %2086 = vmatpush1.msra.mxu0 0.0
          %2087 = vmatprep.subr.mxu0 0.0
          %2088 = vmatpush1.msra.mxu0 0.0
          %2089 = vmatprep.subr.mxu0 0.0
          %2090 = vmatpush1.msra.mxu0 0.0
          %2091 = vmatprep.subr.mxu0 0.0
          %2092 = vmatpush1.msra.mxu0 0.0
          %2093 = vmatprep.subr.mxu0 0.0
          %2094 = vmatpush1.msra.mxu0 0.0
          %2095 = vmatprep.subr.mxu0 0.0
          %2096 = vmatpush1.msra.mxu0 0.0
          %2097 = vmatprep.subr.mxu0 0.0
          %2098 = vmatpush1.msra.mxu0 0.0
          %2099 = vmatprep.subr.mxu0 0.0
          %2100 = vmatpush1.msra.mxu0 0.0
          %2101 = vmatprep.subr.mxu0 0.0
          %2102 = vmatpush1.msra.mxu0 0.0
          %2103 = vmatprep.subr.mxu0 0.0
          %2104 = vmatpush1.msra.mxu0 0.0
          %2105 = vmatprep.subr.mxu0 0.0
          %2106 = vmatpush1.msra.mxu0 0.0
          %2107 = vmatprep.subr.mxu0 0.0
          %2108 = vmatpush1.msra.mxu0 0.0
          %2109 = vmatprep.subr.mxu0 0.0
          %2110 = vmatpush1.msra.mxu0 0.0
          %2111 = vmatprep.subr.mxu0 0.0
          %2112 = vmatpush1.msra.mxu0 0.0
          %2113 = vmatprep.subr.mxu0 0.0
          %2114 = vmatpush1.msra.mxu0 0.0
          %2115 = vmatprep.mubr.f32.mxu0 0.0
          %v2116 = vand.u32 %v1753, 4294901760
          %v2117 = vsub.f32 %v1753, %v2116
          %2118 = vmatmul.mubr.f32.gmra.mrb[0].mxu0 %v2117
          %v2119 = vpop.f32.mrb[0].mxu0
          %v2120 = vadd.f32 %v2016, %v2119
          %v2121 = vpop.f32.mrb[0].mxu0
          %2122 = vdwg.mxu0
          %2123 = vmatprep.subr.mxu0 0.0
          %v2124 = vand.u32 %v1754, 4294901760
          %2125 = vmatpush1.msra.mxu0 %v2124
          %2126 = vmatprep.subr.mxu0 0.0
          %v2127 = vand.u32 %v1755, 4294901760
          %2128 = vmatpush1.msra.mxu0 %v2127
          %2129 = vmatprep.subr.mxu0 0.0
          %v2130 = vand.u32 %v1756, 4294901760
          %2131 = vmatpush1.msra.mxu0 %v2130
          %2132 = vmatprep.subr.mxu0 0.0
          %v2133 = vand.u32 %v1757, 4294901760
          %2134 = vmatpush1.msra.mxu0 %v2133
          %2135 = vmatprep.subr.mxu0 0.0
          %v2136 = vand.u32 %v1758, 4294901760
          %2137 = vmatpush1.msra.mxu0 %v2136
          %2138 = vmatprep.subr.mxu0 0.0
          %v2139 = vand.u32 %v1759, 4294901760
          %2140 = vmatpush1.msra.mxu0 %v2139
          %2141 = vmatprep.subr.mxu0 0.0
          %v2142 = vand.u32 %v1760, 4294901760
          %2143 = vmatpush1.msra.mxu0 %v2142
          %2144 = vmatprep.subr.mxu0 0.0
          %v2145 = vand.u32 %v1761, 4294901760
          %2146 = vmatpush1.msra.mxu0 %v2145
          %2147 = vmatprep.subr.mxu0 0.0
          %v2148 = vand.u32 %v1762, 4294901760
          %2149 = vmatpush1.msra.mxu0 %v2148
          %2150 = vmatprep.subr.mxu0 0.0
          %v2151 = vand.u32 %v1763, 4294901760
          %2152 = vmatpush1.msra.mxu0 %v2151
          %2153 = vmatprep.subr.mxu0 0.0
          %v2154 = vand.u32 %v1764, 4294901760
          %2155 = vmatpush1.msra.mxu0 %v2154
          %2156 = vmatprep.subr.mxu0 0.0
          %v2157 = vand.u32 %v1765, 4294901760
          %2158 = vmatpush1.msra.mxu0 %v2157
          %2159 = vmatprep.subr.mxu0 0.0
          %v2160 = vand.u32 %v1766, 4294901760
          %2161 = vmatpush1.msra.mxu0 %v2160
          %2162 = vmatprep.subr.mxu0 0.0
          %v2163 = vand.u32 %v1767, 4294901760
          %2164 = vmatpush1.msra.mxu0 %v2163
          %2165 = vmatprep.subr.mxu0 0.0
          %v2166 = vand.u32 %v1768, 4294901760
          %2167 = vmatpush1.msra.mxu0 %v2166
          %2168 = vmatprep.subr.mxu0 0.0
          %v2169 = vand.u32 %v1769, 4294901760
          %2170 = vmatpush1.msra.mxu0 %v2169
          %2171 = vmatprep.subr.mxu0 0.0
          %2172 = vmatpush1.msra.mxu0 0.0
          %2173 = vmatprep.subr.mxu0 0.0
          %2174 = vmatpush1.msra.mxu0 0.0
          %2175 = vmatprep.subr.mxu0 0.0
          %2176 = vmatpush1.msra.mxu0 0.0
          %2177 = vmatprep.subr.mxu0 0.0
          %2178 = vmatpush1.msra.mxu0 0.0
          %2179 = vmatprep.subr.mxu0 0.0
          %2180 = vmatpush1.msra.mxu0 0.0
          %2181 = vmatprep.subr.mxu0 0.0
          %2182 = vmatpush1.msra.mxu0 0.0
          %2183 = vmatprep.subr.mxu0 0.0
          %2184 = vmatpush1.msra.mxu0 0.0
          %2185 = vmatprep.subr.mxu0 0.0
          %2186 = vmatpush1.msra.mxu0 0.0
          %2187 = vmatprep.subr.mxu0 0.0
          %2188 = vmatpush1.msra.mxu0 0.0
          %2189 = vmatprep.subr.mxu0 0.0
          %2190 = vmatpush1.msra.mxu0 0.0
          %2191 = vmatprep.subr.mxu0 0.0
          %2192 = vmatpush1.msra.mxu0 0.0
          %2193 = vmatprep.subr.mxu0 0.0
          %2194 = vmatpush1.msra.mxu0 0.0
          %2195 = vmatprep.subr.mxu0 0.0
          %2196 = vmatpush1.msra.mxu0 0.0
          %2197 = vmatprep.subr.mxu0 0.0
          %2198 = vmatpush1.msra.mxu0 0.0
          %2199 = vmatprep.subr.mxu0 0.0
          %2200 = vmatpush1.msra.mxu0 0.0
          %2201 = vmatprep.subr.mxu0 0.0
          %2202 = vmatpush1.msra.mxu0 0.0
          %2203 = vmatprep.mubr.f32.mxu0 0.0
          %v2204 = vand.u32 %v1753, 4294901760
          %v2205 = vsub.f32 %v1753, %v2204
          %v2206 = vand.u32 %v2205, 4294901760
          %2207 = vmatmul.mubr.f32.gmra.mrb[0].mxu0 %v2206
          %v2208 = vpop.f32.mrb[0].mxu0
          %v2209 = vadd.f32 %v2120, %v2208
          %v2210 = vpop.f32.mrb[0].mxu0
          %2211 = vdwg.mxu0
          %2212 = vmatprep.subr.mxu0 0.0
          %v2213 = vand.u32 %v1754, 4294901760
          %v2214 = vsub.f32 %v1754, %v2213
          %v2215 = vand.u32 %v2214, 4294901760
          %2216 = vmatpush1.msra.mxu0 %v2215
          %2217 = vmatprep.subr.mxu0 0.0
          %v2218 = vand.u32 %v1755, 4294901760
          %v2219 = vsub.f32 %v1755, %v2218
          %v2220 = vand.u32 %v2219, 4294901760
          %2221 = vmatpush1.msra.mxu0 %v2220
          %2222 = vmatprep.subr.mxu0 0.0
          %v2223 = vand.u32 %v1756, 4294901760
          %v2224 = vsub.f32 %v1756, %v2223
          %v2225 = vand.u32 %v2224, 4294901760
          %2226 = vmatpush1.msra.mxu0 %v2225
          %2227 = vmatprep.subr.mxu0 0.0
          %v2228 = vand.u32 %v1757, 4294901760
          %v2229 = vsub.f32 %v1757, %v2228
          %v2230 = vand.u32 %v2229, 4294901760
          %2231 = vmatpush1.msra.mxu0 %v2230
          %2232 = vmatprep.subr.mxu0 0.0
          %v2233 = vand.u32 %v1758, 4294901760
          %v2234 = vsub.f32 %v1758, %v2233
          %v2235 = vand.u32 %v2234, 4294901760
          %2236 = vmatpush1.msra.mxu0 %v2235
          %2237 = vmatprep.subr.mxu0 0.0
          %v2238 = vand.u32 %v1759, 4294901760
          %v2239 = vsub.f32 %v1759, %v2238
          %v2240 = vand.u32 %v2239, 4294901760
          %2241 = vmatpush1.msra.mxu0 %v2240
          %2242 = vmatprep.subr.mxu0 0.0
          %v2243 = vand.u32 %v1760, 4294901760
          %v2244 = vsub.f32 %v1760, %v2243
          %v2245 = vand.u32 %v2244, 4294901760
          %2246 = vmatpush1.msra.mxu0 %v2245
          %2247 = vmatprep.subr.mxu0 0.0
          %v2248 = vand.u32 %v1761, 4294901760
          %v2249 = vsub.f32 %v1761, %v2248
          %v2250 = vand.u32 %v2249, 4294901760
          %2251 = vmatpush1.msra.mxu0 %v2250
          %2252 = vmatprep.subr.mxu0 0.0
          %v2253 = vand.u32 %v1762, 4294901760
          %v2254 = vsub.f32 %v1762, %v2253
          %v2255 = vand.u32 %v2254, 4294901760
          %2256 = vmatpush1.msra.mxu0 %v2255
          %2257 = vmatprep.subr.mxu0 0.0
          %v2258 = vand.u32 %v1763, 4294901760
          %v2259 = vsub.f32 %v1763, %v2258
          %v2260 = vand.u32 %v2259, 4294901760
          %2261 = vmatpush1.msra.mxu0 %v2260
          %2262 = vmatprep.subr.mxu0 0.0
          %v2263 = vand.u32 %v1764, 4294901760
          %v2264 = vsub.f32 %v1764, %v2263
          %v2265 = vand.u32 %v2264, 4294901760
          %2266 = vmatpush1.msra.mxu0 %v2265
          %2267 = vmatprep.subr.mxu0 0.0
          %v2268 = vand.u32 %v1765, 4294901760
          %v2269 = vsub.f32 %v1765, %v2268
          %v2270 = vand.u32 %v2269, 4294901760
          %2271 = vmatpush1.msra.mxu0 %v2270
          %2272 = vmatprep.subr.mxu0 0.0
          %v2273 = vand.u32 %v1766, 4294901760
          %v2274 = vsub.f32 %v1766, %v2273
          %v2275 = vand.u32 %v2274, 4294901760
          %2276 = vmatpush1.msra.mxu0 %v2275
          %2277 = vmatprep.subr.mxu0 0.0
          %v2278 = vand.u32 %v1767, 4294901760
          %v2279 = vsub.f32 %v1767, %v2278
          %v2280 = vand.u32 %v2279, 4294901760
          %2281 = vmatpush1.msra.mxu0 %v2280
          %2282 = vmatprep.subr.mxu0 0.0
          %v2283 = vand.u32 %v1768, 4294901760
          %v2284 = vsub.f32 %v1768, %v2283
          %v2285 = vand.u32 %v2284, 4294901760
          %2286 = vmatpush1.msra.mxu0 %v2285
          %2287 = vmatprep.subr.mxu0 0.0
          %v2288 = vand.u32 %v1769, 4294901760
          %v2289 = vsub.f32 %v1769, %v2288
          %v2290 = vand.u32 %v2289, 4294901760
          %2291 = vmatpush1.msra.mxu0 %v2290
          %2292 = vmatprep.subr.mxu0 0.0
          %2293 = vmatpush1.msra.mxu0 0.0
          %2294 = vmatprep.subr.mxu0 0.0
          %2295 = vmatpush1.msra.mxu0 0.0
          %2296 = vmatprep.subr.mxu0 0.0
          %2297 = vmatpush1.msra.mxu0 0.0
          %2298 = vmatprep.subr.mxu0 0.0
          %2299 = vmatpush1.msra.mxu0 0.0
          %2300 = vmatprep.subr.mxu0 0.0
          %2301 = vmatpush1.msra.mxu0 0.0
          %2302 = vmatprep.subr.mxu0 0.0
          %2303 = vmatpush1.msra.mxu0 0.0
          %2304 = vmatprep.subr.mxu0 0.0
          %2305 = vmatpush1.msra.mxu0 0.0
          %2306 = vmatprep.subr.mxu0 0.0
          %2307 = vmatpush1.msra.mxu0 0.0
          %2308 = vmatprep.subr.mxu0 0.0
          %2309 = vmatpush1.msra.mxu0 0.0
          %2310 = vmatprep.subr.mxu0 0.0
          %2311 = vmatpush1.msra.mxu0 0.0
          %2312 = vmatprep.subr.mxu0 0.0
          %2313 = vmatpush1.msra.mxu0 0.0
          %2314 = vmatprep.subr.mxu0 0.0
          %2315 = vmatpush1.msra.mxu0 0.0
          %2316 = vmatprep.subr.mxu0 0.0
          %2317 = vmatpush1.msra.mxu0 0.0
          %2318 = vmatprep.subr.mxu0 0.0
          %2319 = vmatpush1.msra.mxu0 0.0
          %2320 = vmatprep.subr.mxu0 0.0
          %2321 = vmatpush1.msra.mxu0 0.0
          %2322 = vmatprep.subr.mxu0 0.0
          %2323 = vmatpush1.msra.mxu0 0.0
          %2324 = vmatprep.mubr.f32.mxu0 0.0
          %v2325 = vand.u32 %v1753, 4294901760
          %2326 = vmatmul.mubr.f32.gmra.mrb[0].mxu0 %v2325
          %v2327 = vpop.f32.mrb[0].mxu0
          %v2328 = vadd.f32 %v2209, %v2327
          %v2329 = vpop.f32.mrb[0].mxu0
          %2330 = vdwg.mxu0
          %2331 = vmatprep.subr.mxu0 0.0
          %v2332 = vand.u32 %v1754, 4294901760
          %2333 = vmatpush1.msra.mxu0 %v2332
          %2334 = vmatprep.subr.mxu0 0.0
          %v2335 = vand.u32 %v1755, 4294901760
          %2336 = vmatpush1.msra.mxu0 %v2335
          %2337 = vmatprep.subr.mxu0 0.0
          %v2338 = vand.u32 %v1756, 4294901760
          %2339 = vmatpush1.msra.mxu0 %v2338
          %2340 = vmatprep.subr.mxu0 0.0
          %v2341 = vand.u32 %v1757, 4294901760
          %2342 = vmatpush1.msra.mxu0 %v2341
          %2343 = vmatprep.subr.mxu0 0.0
          %v2344 = vand.u32 %v1758, 4294901760
          %2345 = vmatpush1.msra.mxu0 %v2344
          %2346 = vmatprep.subr.mxu0 0.0
          %v2347 = vand.u32 %v1759, 4294901760
          %2348 = vmatpush1.msra.mxu0 %v2347
          %2349 = vmatprep.subr.mxu0 0.0
          %v2350 = vand.u32 %v1760, 4294901760
          %2351 = vmatpush1.msra.mxu0 %v2350
          %2352 = vmatprep.subr.mxu0 0.0
          %v2353 = vand.u32 %v1761, 4294901760
          %2354 = vmatpush1.msra.mxu0 %v2353
          %2355 = vmatprep.subr.mxu0 0.0
          %v2356 = vand.u32 %v1762, 4294901760
          %2357 = vmatpush1.msra.mxu0 %v2356
          %2358 = vmatprep.subr.mxu0 0.0
          %v2359 = vand.u32 %v1763, 4294901760
          %2360 = vmatpush1.msra.mxu0 %v2359
          %2361 = vmatprep.subr.mxu0 0.0
          %v2362 = vand.u32 %v1764, 4294901760
          %2363 = vmatpush1.msra.mxu0 %v2362
          %2364 = vmatprep.subr.mxu0 0.0
          %v2365 = vand.u32 %v1765, 4294901760
          %2366 = vmatpush1.msra.mxu0 %v2365
          %2367 = vmatprep.subr.mxu0 0.0
          %v2368 = vand.u32 %v1766, 4294901760
          %2369 = vmatpush1.msra.mxu0 %v2368
          %2370 = vmatprep.subr.mxu0 0.0
          %v2371 = vand.u32 %v1767, 4294901760
          %2372 = vmatpush1.msra.mxu0 %v2371
          %2373 = vmatprep.subr.mxu0 0.0
          %v2374 = vand.u32 %v1768, 4294901760
          %2375 = vmatpush1.msra.mxu0 %v2374
          %2376 = vmatprep.subr.mxu0 0.0
          %v2377 = vand.u32 %v1769, 4294901760
          %2378 = vmatpush1.msra.mxu0 %v2377
          %2379 = vmatprep.subr.mxu0 0.0
          %2380 = vmatpush1.msra.mxu0 0.0
          %2381 = vmatprep.subr.mxu0 0.0
          %2382 = vmatpush1.msra.mxu0 0.0
          %2383 = vmatprep.subr.mxu0 0.0
          %2384 = vmatpush1.msra.mxu0 0.0
          %2385 = vmatprep.subr.mxu0 0.0
          %2386 = vmatpush1.msra.mxu0 0.0
          %2387 = vmatprep.subr.mxu0 0.0
          %2388 = vmatpush1.msra.mxu0 0.0
          %2389 = vmatprep.subr.mxu0 0.0
          %2390 = vmatpush1.msra.mxu0 0.0
          %2391 = vmatprep.subr.mxu0 0.0
          %2392 = vmatpush1.msra.mxu0 0.0
          %2393 = vmatprep.subr.mxu0 0.0
          %2394 = vmatpush1.msra.mxu0 0.0
          %2395 = vmatprep.subr.mxu0 0.0
          %2396 = vmatpush1.msra.mxu0 0.0
          %2397 = vmatprep.subr.mxu0 0.0
          %2398 = vmatpush1.msra.mxu0 0.0
          %2399 = vmatprep.subr.mxu0 0.0
          %2400 = vmatpush1.msra.mxu0 0.0
          %2401 = vmatprep.subr.mxu0 0.0
          %2402 = vmatpush1.msra.mxu0 0.0
          %2403 = vmatprep.subr.mxu0 0.0
          %2404 = vmatpush1.msra.mxu0 0.0
          %2405 = vmatprep.subr.mxu0 0.0
          %2406 = vmatpush1.msra.mxu0 0.0
          %2407 = vmatprep.subr.mxu0 0.0
          %2408 = vmatpush1.msra.mxu0 0.0
          %2409 = vmatprep.subr.mxu0 0.0
          %2410 = vmatpush1.msra.mxu0 0.0
          %2411 = vmatprep.mubr.f32.mxu0 0.0
          %v2412 = vand.u32 %v1753, 4294901760
          %2413 = vmatmul.mubr.f32.gmra.mrb[0].mxu0 %v2412
          %v2414 = vpop.f32.mrb[0].mxu0
          %v2415 = vadd.f32 %v2328, %v2414
          %v2416 = vpop.f32.mrb[0].mxu0
          %2417 = vdwg.mxu0
          %2418 = vst [vmem:[%s457] sm:$0xff] %v2415
        $region80: #{tpu_custom_call.1} parent=55 // pred_fallthru
          _
        %s2419 = sand.u32 %s261, 1
        %s2420 = scalar_lea.sflag [#allocation5], %s2419
        %s2421 = sand.u32 %s261, 1
        %s2422 = smul.addr %s2421, 8
        %s2423 = scalar_lea.vmem [#allocation10], %s2422
        // Predicated region
        $region81: #{tpu_custom_call.1} parent=55 // pred_check
          %p2424 = pneg %p271
        $region82: #{tpu_custom_call.1} parent=55 // pred_check_branch
          %2426 = sbr.rel (%p2424) target = $region84
        $region83: #{tpu_custom_call.1} parent=55 // pred_region
          %s2428 = ssub.s32 128, 128
          %2429 = vsyncadd %s2420, %s2428
          %s2430 = smul.addr %s31, 128
          %s2431 = scalar_lea.hbm %s9, %s2430
          %s2433 = sshll.u32 %s2423, 4
          %s2434 = int_to_ptr.vmem [resolvable:$true] %s2433
          %2436 = dma.vmem_to_hbm [thread:$0]  %s2434, 128, %s2431, %s2420
        $region84: #{tpu_custom_call.1} parent=55 // pred_fallthru
          _
      $region56: #{tpu_custom_call.1} parent=5 // pred_fallthru
        _
      %p2437 = scmp.le.s32.totalorder 2, %s22
      // Predicated region
      $region85: #{tpu_custom_call.1} parent=5 // pred_check
        %p2438 = pneg %p2437
      $region86: #{tpu_custom_call.1} parent=5 // pred_check_branch
        %2440 = sbr.rel (%p2438) target = $region88
      $region87: #{tpu_custom_call.1} parent=5 // pred_region
        %s2441 = ssub.s32 %s22, 2
        // Predicated region
        $region89: #{tpu_custom_call.1} parent=87 // pred_check
          %p2442 = pneg %p277
        $region90: #{tpu_custom_call.1} parent=87 // pred_check_branch
          %2444 = sbr.rel (%p2442) target = $region92
        $region91: #{tpu_custom_call.1} parent=87 // pred_region
          %s2445 = sand.u32 %s262, 1
          %s2446 = scalar_lea.sflag [#allocation5], %s2445
          %s2447 = sand.u32 %s262, 1
          %s2448 = smul.addr %s2447, 8
          %s2449 = scalar_lea.vmem [#allocation10], %s2448
          %2450 = dma.done %s2446, 128
        $region92: #{tpu_custom_call.1} parent=87 // pred_fallthru
          _
      $region88: #{tpu_custom_call.1} parent=5 // pred_fallthru
        _
    $region6: #{tpu_custom_call.1} parent=1 // loop_footer
      %s26 = sadd.s32 1, %s22
    $region7: #{tpu_custom_call.1} parent=1 // loop_footer_branch
      %21 = sbr.rel target = $region3
    $region8: #{tpu_custom_call.1} parent=1 // loop_exit
      _
    %2451 = vsyncpa [#allocation4], 1
    %s2452 = scalar_lea.sflag [#allocation4], 1
    %2453 = vsyncpa %s2452, 1
    %2454 = vsyncpa [#allocation7], 1
    %2455 = vsyncpa [#allocation5], 1
    %s2456 = scalar_lea.sflag [#allocation5], 1
    %2457 = vsyncpa %s2456, 1

</llo_original>
